<compile_context>
chip_gen: v5e
topology: v5e:2x2
jax: 0.10.0
libtpu: 0.0.40
codegen_flags: <defaults>
</compile_context>

<pallas_src>
import jax
import jax.numpy as jnp
import numpy as np
from jax import lax
from jax.experimental import pallas as pl
from jax.experimental.pallas import tpu as pltpu


def _round_up(x, m):
    return ((x + m - 1) // m) * m


# ----------------------------- Pallas kernel -------------------------------
def _make_kernel(H, W, Wp, L, Lout, Psrc, C, Cout, Nb):
    """Kernel closure over the static geometry."""
    offs = [ky * Wp + kx for ky in range(3) for kx in range(3)]

    def lane_cat(parts):
        return parts[0] if len(parts) == 1 else jnp.concatenate(parts, axis=-1)

    def im2col(imgs):
        # imgs: list of Nb (Cin, Psrc) bf16 slabs (zero-padded flat images).
        # 3x3 "same" conv on a zero-padded, row-flattened image == 9 contiguous
        # lane-shifted views stacked along the contraction axis.
        rows = []
        for off in offs:
            rows.append(lane_cat([img[:, off:off + Lout] for img in imgs]))
        return jnp.concatenate(rows, axis=0)                # (9*Cin, Nb*Lout)

    def kernel(x1_ref, x2_ref, xx_ref, w1_ref, b1_ref, w2a_ref, w2b_ref,
               b2_ref, o_ref, pad_scr):
        # --- fusion_sum / fusion_mul / fusion_max in f32 (VPU), cast once ---
        x1 = x1_ref[...]                                    # (Nb, C, Psrc) f32
        x2 = x2_ref[...]
        fused = jnp.concatenate(
            [x1 + x2, x1 * x2, jnp.maximum(x1, x2)], axis=1)  # (Nb, 3C, Psrc)
        fused = fused.astype(jnp.bfloat16)
        xx = xx_ref[...].astype(jnp.bfloat16)               # (Nb, C, Psrc)

        # Valid-column mask over one image's Lout columns (junk: col >= L or
        # col % Wp >= W), generated in-kernel.
        col = lax.broadcasted_iota(jnp.int32, (1, Lout), 1)
        valid = jnp.logical_and(col < L, col % Wp < W).astype(jnp.float32)
        mask = lane_cat([valid] * Nb)                       # (1, Nb*Lout)

        # --- layer1: Conv(3C -> C, 3x3, pad=1) + BN(folded) + ReLU ----------
        p1 = im2col([fused[n] for n in range(Nb)])          # (27C, Nb*Lout) bf16
        out1 = jnp.dot(w1_ref[...], p1, preferred_element_type=jnp.float32)
        out1 = jnp.maximum(out1 + b1_ref[...], 0.0) * mask  # (C, Nb*Lout) f32

        # --- re-pad layer1's output into the persistent bf16 scratch --------
        # scratch image n occupies columns [n*Psrc, (n+1)*Psrc); the padded
        # image position (y+1, x+1) lands at offset Wp+1 + (y*Wp + x).
        pad_scr[...] = jnp.zeros_like(pad_scr)
        out1_bf = out1.astype(jnp.bfloat16)
        for n in range(Nb):
            base = n * Psrc + Wp + 1
            pad_scr[:, base:base + Lout] = out1_bf[:, n * Lout:(n + 1) * Lout]

        # --- layer2: Conv(2C -> Cout, 3x3, pad=1) + BN(folded) + ReLU -------
        # Split the 2C input channels: out1-half reads the scratch, xx-half
        # reads xx directly (no re-copy), two accumulating matmuls.
        scr_imgs = [pad_scr[:, n * Psrc:(n + 1) * Psrc] for n in range(Nb)]
        p2a = im2col(scr_imgs)                              # (9C, Nb*Lout) bf16
        p2b = im2col([xx[n] for n in range(Nb)])            # (9C, Nb*Lout) bf16
        acc = jnp.dot(w2a_ref[...], p2a, preferred_element_type=jnp.float32)
        acc = acc + jnp.dot(w2b_ref[...], p2b, preferred_element_type=jnp.float32)
        out2 = jnp.maximum(acc + b2_ref[...], 0.0)          # (Cout, Nb*Lout)

        for n in range(Nb):
            o_ref[n] = out2[:, n * Lout:(n + 1) * Lout]

    return kernel


# ------------------------------ host wrapper --------------------------------
def _fold_bn(w, b, gamma, beta, mean, var, eps=1e-5):
    """Fold eval-mode BatchNorm into conv weight (Cout, Cin, 3, 3) and bias."""
    s = gamma / jnp.sqrt(var + eps)
    w_f = w * s[:, None, None, None]
    b_f = b * s + beta - mean * s
    return w_f, b_f


def _pack_weight(w):
    """(Cout, Cin, 3, 3) torch layout -> (Cout, 9*Cin) matmul layout,
    column index = (ky*3 + kx)*Cin + cin (matches the im2col row order)."""
    cout, cin, _, _ = w.shape
    return jnp.transpose(w, (0, 2, 3, 1)).reshape(cout, 9 * cin)


def mixed_fusion_block(x1, x2, xx, params, images_per_block=None):
    """x1, x2, xx: NCHW float32. Returns NCHW float32 (N, out_dim, H, W)."""
    N, C, H, W = x1.shape
    Hp, Wp = H + 2, W + 2
    L = H * Wp                                   # flat output length per image
    Lout = _round_up(L, 128)                     # lane-dense output width
    Psrc = _round_up(Lout + 2 * Wp + 2, 128)     # padded-source width (in bounds)

    if images_per_block is None:
        # >=2 grid steps when N >= 2 (both v7x TensorCores busy) while still
        # batching several images onto the lane axis for larger N.
        images_per_block = max(1, (N + 1) // 2)
    Nb = images_per_block
    n_blocks = -(-N // Nb)
    Npad = n_blocks * Nb

    w1, b1 = _fold_bn(params["w1"], params["b1"], params["bn1_g"],
                      params["bn1_b"], params["bn1_m"], params["bn1_v"])
    w2, b2 = _fold_bn(params["w2"], params["b2"], params["bn2_g"],
                      params["bn2_b"], params["bn2_m"], params["bn2_v"])
    Cout = w2.shape[0]

    # bf16 MXU operands; f32 biases.
    w1p = _pack_weight(w1).astype(jnp.bfloat16)              # (C, 27C)
    w2a = _pack_weight(w2[:, :C]).astype(jnp.bfloat16)       # (Cout, 9C) out1-half
    w2b = _pack_weight(w2[:, C:]).astype(jnp.bfloat16)       # (Cout, 9C) xx-half
    b1p = b1.reshape(C, 1).astype(jnp.float32)
    b2p = b2.reshape(Cout, 1).astype(jnp.float32)

    # Host-side zero pad + flatten: NCHW -> (Npad, C, Psrc), 128-multiple lanes.
    def pad_flat(x):
        xp = jnp.pad(x, ((0, Npad - N), (0, 0), (1, 1), (1, 1)))
        xp = xp.reshape(Npad, C, Hp * Wp)
        return jnp.pad(xp, ((0, 0), (0, 0), (0, Psrc - Hp * Wp)))

    x1p, x2p, xxp = pad_flat(x1), pad_flat(x2), pad_flat(xx)

    flops = (2 * Npad * Lout * (27 * C * C + 18 * C * Cout)
             + 8 * Npad * C * Psrc)
    bytes_accessed = (4 * (3 * Npad * C * Psrc + Npad * Cout * Lout)
                      + 2 * (w1p.size + w2a.size + w2b.size)
                      + 4 * (b1p.size + b2p.size))

    out_flat = pl.pallas_call(
        _make_kernel(H, W, Wp, L, Lout, Psrc, C, Cout, Nb),
        out_shape=jax.ShapeDtypeStruct((Npad, Cout, Lout), jnp.float32),
        grid_spec=pltpu.PrefetchScalarGridSpec(
            num_scalar_prefetch=0,
            grid=(n_blocks,),
            in_specs=[
                pl.BlockSpec((Nb, C, Psrc), lambda i: (i, 0, 0)),
                pl.BlockSpec((Nb, C, Psrc), lambda i: (i, 0, 0)),
                pl.BlockSpec((Nb, C, Psrc), lambda i: (i, 0, 0)),
                pl.BlockSpec(w1p.shape, lambda i: (0, 0)),   # resident weights
                pl.BlockSpec(b1p.shape, lambda i: (0, 0)),
                pl.BlockSpec(w2a.shape, lambda i: (0, 0)),
                pl.BlockSpec(w2b.shape, lambda i: (0, 0)),
                pl.BlockSpec(b2p.shape, lambda i: (0, 0)),
            ],
            out_specs=pl.BlockSpec((Nb, Cout, Lout), lambda i: (i, 0, 0)),
            scratch_shapes=[pltpu.VMEM((C, Nb * Psrc), jnp.bfloat16)],
        ),
        compiler_params=pltpu.CompilerParams(
            dimension_semantics=("parallel",),
            vmem_limit_bytes=32 * 1024 * 1024),
        cost_estimate=pl.CostEstimate(flops=int(flops), transcendentals=0,
                                      bytes_accessed=int(bytes_accessed)),
    )(x1p, x2p, xxp, w1p, b1p, w2a, w2b, b2p)

    # Drop padded batch/junk columns and restore NCHW (already channel-major).
    return out_flat[:N, :, :L].reshape(N, Cout, H, Wp)[:, :, :, :W]


# ----------------------------- pure-JAX reference ---------------------------
def reference(x1, x2, xx, params):
    w1, b1 = _fold_bn(params["w1"], params["b1"], params["bn1_g"],
                      params["bn1_b"], params["bn1_m"], params["bn1_v"])
    w2, b2 = _fold_bn(params["w2"], params["b2"], params["bn2_g"],
                      params["bn2_b"], params["bn2_m"], params["bn2_v"])

    def conv(x_nchw, w, b):
        y = lax.conv_general_dilated(
            x_nchw, w, window_strides=(1, 1), padding="SAME",
            dimension_numbers=("NCHW", "OIHW", "NCHW"))
        return jnp.maximum(y + b[None, :, None, None], 0.0)

    fused = jnp.concatenate([x1 + x2, x1 * x2, jnp.maximum(x1, x2)], axis=1)
    out1 = conv(fused, w1, b1)
    out2 = conv(jnp.concatenate([out1, xx], axis=1), w2, b2)
    return out2


# --------------------------------- main --------------------------------------
if __name__ == "__main__":
    N, in_dim, out_dim, H, W = 2, 4, 8, 16, 16

    key = jax.random.PRNGKey(0)
    ks = jax.random.split(key, 12)

    x1 = jax.random.normal(ks[0], (N, in_dim, H, W), jnp.float32)
    x2 = jax.random.normal(ks[1], (N, in_dim, H, W), jnp.float32)
    xx = jax.random.normal(ks[2], (N, in_dim, H, W), jnp.float32)

    params = {
        # layer1: Conv2d(in_dim*3 -> in_dim, 3x3) + BN(in_dim)
        "w1": 0.1 * jax.random.normal(ks[3], (in_dim, in_dim * 3, 3, 3), jnp.float32),
        "b1": 0.1 * jax.random.normal(ks[4], (in_dim,), jnp.float32),
        "bn1_g": 1.0 + 0.1 * jax.random.normal(ks[5], (in_dim,), jnp.float32),
        "bn1_b": 0.1 * jax.random.normal(ks[6], (in_dim,), jnp.float32),
        "bn1_m": 0.05 * jax.random.normal(ks[7], (in_dim,), jnp.float32),
        "bn1_v": jnp.abs(1.0 + 0.1 * jax.random.normal(ks[8], (in_dim,), jnp.float32)),
        # layer2: Conv2d(in_dim*2 -> out_dim, 3x3) + BN(out_dim)
        "w2": 0.1 * jax.random.normal(ks[9], (out_dim, in_dim * 2, 3, 3), jnp.float32),
        "b2": 0.1 * jax.random.normal(ks[10], (out_dim,), jnp.float32),
        "bn2_g": jnp.ones((out_dim,), jnp.float32),
        "bn2_b": jnp.zeros((out_dim,), jnp.float32),
        "bn2_m": jnp.zeros((out_dim,), jnp.float32),
        "bn2_v": jnp.ones((out_dim,), jnp.float32),
    }

    out = jax.block_until_ready(mixed_fusion_block(x1, x2, xx, params))
    ref = jax.block_until_ready(reference(x1, x2, xx, params))

    assert out.shape == (N, out_dim, H, W), out.shape
    # bf16 MXU operands (f32 accumulate) -> compare against the f32 reference
    # with a tolerance sized for bf16 operand rounding over K<=108 terms.
    np.testing.assert_allclose(np.asarray(out), np.asarray(ref),
                               rtol=5e-2, atol=5e-2)
    print("KERNEL_OK")
</pallas_src>

<mosaic_0001>
module attributes {stable_mosaic.version = 11 : i64} {
  func.func @kernel(%arg0: i32, %arg1: memref<1x4x512xf32, #tpu.memory_space<vmem>>, %arg2: memref<1x4x512xf32, #tpu.memory_space<vmem>>, %arg3: memref<1x4x512xf32, #tpu.memory_space<vmem>>, %arg4: memref<4x108xbf16, #tpu.memory_space<vmem>>, %arg5: memref<4x1xf32, #tpu.memory_space<vmem>>, %arg6: memref<8x36xbf16, #tpu.memory_space<vmem>>, %arg7: memref<8x36xbf16, #tpu.memory_space<vmem>>, %arg8: memref<8x1xf32, #tpu.memory_space<vmem>>, %arg9: memref<1x8x384xf32, #tpu.memory_space<vmem>>, %arg10: memref<4x512xbf16, #tpu.memory_space<vmem>>) attributes {dimension_semantics = [#tpu.dimension_semantics<parallel>], iteration_bounds = array<i64: 2>, scalar_prefetch = 0 : i64, scratch_operands = 1 : i64, tpu.core_type = #tpu.core_type<tc>, window_params = [{transform_indices = @transform_0, window_bounds = array<i64: 1, 4, 512>}, {transform_indices = @transform_1, window_bounds = array<i64: 1, 4, 512>}, {transform_indices = @transform_2, window_bounds = array<i64: 1, 4, 512>}, {pipeline_mode = #tpu.pipeline_mode<synchronous>, transform_indices = @transform_3, window_bounds = array<i64: 4, 108>}, {pipeline_mode = #tpu.pipeline_mode<synchronous>, transform_indices = @transform_4, window_bounds = array<i64: 4, 1>}, {pipeline_mode = #tpu.pipeline_mode<synchronous>, transform_indices = @transform_5, window_bounds = array<i64: 8, 36>}, {pipeline_mode = #tpu.pipeline_mode<synchronous>, transform_indices = @transform_6, window_bounds = array<i64: 8, 36>}, {pipeline_mode = #tpu.pipeline_mode<synchronous>, transform_indices = @transform_7, window_bounds = array<i64: 8, 1>}, {transform_indices = @transform_8, window_bounds = array<i64: 1, 8, 384>}]} {
    %c0 = arith.constant 0 : index
    %c0_0 = arith.constant 0 : index
    %c0_1 = arith.constant 0 : index
    %0 = vector.load %arg1[%c0, %c0_0, %c0_1] : memref<1x4x512xf32, #tpu.memory_space<vmem>>, vector<1x4x512xf32>
    %c0_2 = arith.constant 0 : index
    %c0_3 = arith.constant 0 : index
    %c0_4 = arith.constant 0 : index
    %1 = vector.load %arg2[%c0_2, %c0_3, %c0_4] : memref<1x4x512xf32, #tpu.memory_space<vmem>>, vector<1x4x512xf32>
    %2 = arith.addf %0, %1 : vector<1x4x512xf32>
    %3 = arith.mulf %0, %1 : vector<1x4x512xf32>
    %4 = arith.maximumf %0, %1 : vector<1x4x512xf32>
    %5 = tpu.concatenate %2, %3, %4 in 1 : vector<1x4x512xf32>, vector<1x4x512xf32>, vector<1x4x512xf32> -> vector<1x12x512xf32>
    %6 = arith.truncf %5 : vector<1x12x512xf32> to vector<1x12x512xbf16>
    %c0_5 = arith.constant 0 : index
    %c0_6 = arith.constant 0 : index
    %c0_7 = arith.constant 0 : index
    %7 = vector.load %arg3[%c0_5, %c0_6, %c0_7] : memref<1x4x512xf32, #tpu.memory_space<vmem>>, vector<1x4x512xf32>
    %8 = arith.truncf %7 : vector<1x4x512xf32> to vector<1x4x512xbf16>
    %9 = tpu.iota {dimensions = array<i32: 1>} : vector<1x384xi32>
    %c288_i32 = arith.constant 288 : i32
    %10 = vector.broadcast %c288_i32 : i32 to vector<1x384xi32>
    %11 = arith.cmpi slt, %9, %10 : vector<1x384xi32>
    %c18_i32 = arith.constant 18 : i32
    %c0_i32 = arith.constant 0 : i32
    %12 = arith.cmpi eq, %c18_i32, %c0_i32 : i32
    %c1_i32 = arith.constant 1 : i32
    %13 = arith.select %12, %c1_i32, %c18_i32 : i32
    %14 = vector.broadcast %13 : i32 to vector<1x384xi32>
    %15 = arith.remsi %9, %14 : vector<1x384xi32>
    %c0_i32_8 = arith.constant 0 : i32
    %16 = vector.broadcast %c0_i32_8 : i32 to vector<1x384xi32>
    %17 = arith.cmpi ne, %15, %16 : vector<1x384xi32>
    %c0_i32_9 = arith.constant 0 : i32
    %18 = vector.broadcast %c0_i32_9 : i32 to vector<1x384xi32>
    %19 = arith.cmpi slt, %15, %18 : vector<1x384xi32>
    %c0_i32_10 = arith.constant 0 : i32
    %20 = arith.cmpi slt, %13, %c0_i32_10 : i32
    %21 = vector.broadcast %20 : i1 to vector<1x384xi1>
    %22 = vector.broadcast %21 : vector<1x384xi1> to vector<1x384xi1>
    %23 = arith.xori %19, %22 : vector<1x384xi1>
    %24 = arith.andi %23, %17 : vector<1x384xi1>
    %25 = vector.broadcast %13 : i32 to vector<1x384xi32>
    %26 = arith.addi %15, %25 : vector<1x384xi32>
    %27 = arith.select %24, %26, %15 : vector<1x384xi1>, vector<1x384xi32>
    %c16_i32 = arith.constant 16 : i32
    %28 = vector.broadcast %c16_i32 : i32 to vector<1x384xi32>
    %29 = arith.cmpi slt, %27, %28 : vector<1x384xi32>
    %30 = arith.andi %11, %29 : vector<1x384xi1>
    %31 = arith.extui %30 : vector<1x384xi1> to vector<1x384xi32>
    %32 = arith.sitofp %31 : vector<1x384xi32> to vector<1x384xf32>
    %33 = vector.shape_cast %6 : vector<1x12x512xbf16> to vector<12x512xbf16>
    %34 = vector.extract_strided_slice %33 {offsets = [0, 0], sizes = [12, 384], strides = [1, 1]} : vector<12x512xbf16> to vector<12x384xbf16>
    %35 = vector.extract_strided_slice %33 {offsets = [0, 1], sizes = [12, 384], strides = [1, 1]} : vector<12x512xbf16> to vector<12x384xbf16>
    %36 = vector.extract_strided_slice %33 {offsets = [0, 2], sizes = [12, 384], strides = [1, 1]} : vector<12x512xbf16> to vector<12x384xbf16>
    %37 = vector.extract_strided_slice %33 {offsets = [0, 18], sizes = [12, 384], strides = [1, 1]} : vector<12x512xbf16> to vector<12x384xbf16>
    %38 = vector.extract_strided_slice %33 {offsets = [0, 19], sizes = [12, 384], strides = [1, 1]} : vector<12x512xbf16> to vector<12x384xbf16>
    %39 = vector.extract_strided_slice %33 {offsets = [0, 20], sizes = [12, 384], strides = [1, 1]} : vector<12x512xbf16> to vector<12x384xbf16>
    %40 = vector.extract_strided_slice %33 {offsets = [0, 36], sizes = [12, 384], strides = [1, 1]} : vector<12x512xbf16> to vector<12x384xbf16>
    %41 = vector.extract_strided_slice %33 {offsets = [0, 37], sizes = [12, 384], strides = [1, 1]} : vector<12x512xbf16> to vector<12x384xbf16>
    %42 = vector.extract_strided_slice %33 {offsets = [0, 38], sizes = [12, 384], strides = [1, 1]} : vector<12x512xbf16> to vector<12x384xbf16>
    %43 = tpu.concatenate %34, %35, %36, %37, %38, %39, %40, %41, %42 in 0 : vector<12x384xbf16>, vector<12x384xbf16>, vector<12x384xbf16>, vector<12x384xbf16>, vector<12x384xbf16>, vector<12x384xbf16>, vector<12x384xbf16>, vector<12x384xbf16>, vector<12x384xbf16> -> vector<108x384xbf16>
    %c0_11 = arith.constant 0 : index
    %c0_12 = arith.constant 0 : index
    %44 = vector.load %arg4[%c0_11, %c0_12] : memref<4x108xbf16, #tpu.memory_space<vmem>>, vector<4x108xbf16>
    %cst = arith.constant dense<0.000000e+00> : vector<4x384xf32>
    %45 = tpu.matmul %44, %43, %cst {dimension_numbers = #tpu.dot_dimension_numbers<[1], [0], [0], [1], [0, 0, 1, 1], [], []>} : vector<4x108xbf16>, vector<108x384xbf16>, vector<4x384xf32> -> vector<4x384xf32>
    %c0_13 = arith.constant 0 : index
    %c0_14 = arith.constant 0 : index
    %46 = vector.load %arg5[%c0_13, %c0_14] : memref<4x1xf32, #tpu.memory_space<vmem>>, vector<4x1xf32>
    %47 = vector.broadcast %46 : vector<4x1xf32> to vector<4x384xf32>
    %48 = arith.addf %45, %47 : vector<4x384xf32>
    %cst_15 = arith.constant 0.000000e+00 : f32
    %49 = vector.broadcast %cst_15 : f32 to vector<4x384xf32>
    %50 = arith.maximumf %48, %49 : vector<4x384xf32>
    %51 = vector.broadcast %32 : vector<1x384xf32> to vector<4x384xf32>
    %52 = arith.mulf %50, %51 : vector<4x384xf32>
    %cst_16 = arith.constant 0.000000e+00 : bf16
    %53 = vector.broadcast %cst_16 : bf16 to vector<4x512xbf16>
    %c0_17 = arith.constant 0 : index
    %c0_18 = arith.constant 0 : index
    %54 = vector.load %arg10[%c0_17, %c0_18] : memref<4x512xbf16, #tpu.memory_space<vmem>>, vector<4x512xbf16>
    tpu.vector_store %arg10[%c0_17, %c0_18], %53 {strides = array<i32>} : memref<4x512xbf16, #tpu.memory_space<vmem>>, vector<4x512xbf16>,
    %55 = arith.truncf %52 : vector<4x384xf32> to vector<4x384xbf16>
    %c0_19 = arith.constant 0 : index
    %c19 = arith.constant 19 : index
    %56 = vector.load %arg10[%c0_19, %c19] : memref<4x512xbf16, #tpu.memory_space<vmem>>, vector<4x384xbf16>
    tpu.vector_store %arg10[%c0_19, %c19], %55 {strides = array<i32>} : memref<4x512xbf16, #tpu.memory_space<vmem>>, vector<4x384xbf16>,
    %c0_20 = arith.constant 0 : index
    %c0_21 = arith.constant 0 : index
    %57 = vector.load %arg10[%c0_20, %c0_21] : memref<4x512xbf16, #tpu.memory_space<vmem>>, vector<4x512xbf16>
    %58 = vector.extract_strided_slice %57 {offsets = [0, 0], sizes = [4, 384], strides = [1, 1]} : vector<4x512xbf16> to vector<4x384xbf16>
    %59 = vector.extract_strided_slice %57 {offsets = [0, 1], sizes = [4, 384], strides = [1, 1]} : vector<4x512xbf16> to vector<4x384xbf16>
    %60 = vector.extract_strided_slice %57 {offsets = [0, 2], sizes = [4, 384], strides = [1, 1]} : vector<4x512xbf16> to vector<4x384xbf16>
    %61 = vector.extract_strided_slice %57 {offsets = [0, 18], sizes = [4, 384], strides = [1, 1]} : vector<4x512xbf16> to vector<4x384xbf16>
    %62 = vector.extract_strided_slice %57 {offsets = [0, 19], sizes = [4, 384], strides = [1, 1]} : vector<4x512xbf16> to vector<4x384xbf16>
    %63 = vector.extract_strided_slice %57 {offsets = [0, 20], sizes = [4, 384], strides = [1, 1]} : vector<4x512xbf16> to vector<4x384xbf16>
    %64 = vector.extract_strided_slice %57 {offsets = [0, 36], sizes = [4, 384], strides = [1, 1]} : vector<4x512xbf16> to vector<4x384xbf16>
    %65 = vector.extract_strided_slice %57 {offsets = [0, 37], sizes = [4, 384], strides = [1, 1]} : vector<4x512xbf16> to vector<4x384xbf16>
    %66 = vector.extract_strided_slice %57 {offsets = [0, 38], sizes = [4, 384], strides = [1, 1]} : vector<4x512xbf16> to vector<4x384xbf16>
    %67 = tpu.concatenate %58, %59, %60, %61, %62, %63, %64, %65, %66 in 0 : vector<4x384xbf16>, vector<4x384xbf16>, vector<4x384xbf16>, vector<4x384xbf16>, vector<4x384xbf16>, vector<4x384xbf16>, vector<4x384xbf16>, vector<4x384xbf16>, vector<4x384xbf16> -> vector<36x384xbf16>
    %68 = vector.shape_cast %8 : vector<1x4x512xbf16> to vector<4x512xbf16>
    %69 = vector.extract_strided_slice %68 {offsets = [0, 0], sizes = [4, 384], strides = [1, 1]} : vector<4x512xbf16> to vector<4x384xbf16>
    %70 = vector.extract_strided_slice %68 {offsets = [0, 1], sizes = [4, 384], strides = [1, 1]} : vector<4x512xbf16> to vector<4x384xbf16>
    %71 = vector.extract_strided_slice %68 {offsets = [0, 2], sizes = [4, 384], strides = [1, 1]} : vector<4x512xbf16> to vector<4x384xbf16>
    %72 = vector.extract_strided_slice %68 {offsets = [0, 18], sizes = [4, 384], strides = [1, 1]} : vector<4x512xbf16> to vector<4x384xbf16>
    %73 = vector.extract_strided_slice %68 {offsets = [0, 19], sizes = [4, 384], strides = [1, 1]} : vector<4x512xbf16> to vector<4x384xbf16>
    %74 = vector.extract_strided_slice %68 {offsets = [0, 20], sizes = [4, 384], strides = [1, 1]} : vector<4x512xbf16> to vector<4x384xbf16>
    %75 = vector.extract_strided_slice %68 {offsets = [0, 36], sizes = [4, 384], strides = [1, 1]} : vector<4x512xbf16> to vector<4x384xbf16>
    %76 = vector.extract_strided_slice %68 {offsets = [0, 37], sizes = [4, 384], strides = [1, 1]} : vector<4x512xbf16> to vector<4x384xbf16>
    %77 = vector.extract_strided_slice %68 {offsets = [0, 38], sizes = [4, 384], strides = [1, 1]} : vector<4x512xbf16> to vector<4x384xbf16>
    %78 = tpu.concatenate %69, %70, %71, %72, %73, %74, %75, %76, %77 in 0 : vector<4x384xbf16>, vector<4x384xbf16>, vector<4x384xbf16>, vector<4x384xbf16>, vector<4x384xbf16>, vector<4x384xbf16>, vector<4x384xbf16>, vector<4x384xbf16>, vector<4x384xbf16> -> vector<36x384xbf16>
    %c0_22 = arith.constant 0 : index
    %c0_23 = arith.constant 0 : index
    %79 = vector.load %arg6[%c0_22, %c0_23] : memref<8x36xbf16, #tpu.memory_space<vmem>>, vector<8x36xbf16>
    %cst_24 = arith.constant dense<0.000000e+00> : vector<8x384xf32>
    %80 = tpu.matmul %79, %67, %cst_24 {dimension_numbers = #tpu.dot_dimension_numbers<[1], [0], [0], [1], [0, 0, 1, 1], [], []>} : vector<8x36xbf16>, vector<36x384xbf16>, vector<8x384xf32> -> vector<8x384xf32>
    %c0_25 = arith.constant 0 : index
    %c0_26 = arith.constant 0 : index
    %81 = vector.load %arg7[%c0_25, %c0_26] : memref<8x36xbf16, #tpu.memory_space<vmem>>, vector<8x36xbf16>
    %cst_27 = arith.constant dense<0.000000e+00> : vector<8x384xf32>
    %82 = tpu.matmul %81, %78, %cst_27 {dimension_numbers = #tpu.dot_dimension_numbers<[1], [0], [0], [1], [0, 0, 1, 1], [], []>} : vector<8x36xbf16>, vector<36x384xbf16>, vector<8x384xf32> -> vector<8x384xf32>
    %83 = arith.addf %80, %82 : vector<8x384xf32>
    %c0_28 = arith.constant 0 : index
    %c0_29 = arith.constant 0 : index
    %84 = vector.load %arg8[%c0_28, %c0_29] : memref<8x1xf32, #tpu.memory_space<vmem>>, vector<8x1xf32>
    %85 = vector.broadcast %84 : vector<8x1xf32> to vector<8x384xf32>
    %86 = arith.addf %83, %85 : vector<8x384xf32>
    %cst_30 = arith.constant 0.000000e+00 : f32
    %87 = vector.broadcast %cst_30 : f32 to vector<8x384xf32>
    %88 = arith.maximumf %86, %87 : vector<8x384xf32>
    %c0_31 = arith.constant 0 : index
    %c0_32 = arith.constant 0 : index
    %c0_33 = arith.constant 0 : index
    %89 = vector.load %arg9[%c0_31, %c0_32, %c0_33] : memref<1x8x384xf32, #tpu.memory_space<vmem>>, vector<1x8x384xf32>
    %90 = vector.shape_cast %89 : vector<1x8x384xf32> to vector<8x384xf32>
    %91 = vector.shape_cast %88 : vector<8x384xf32> to vector<1x8x384xf32>
    tpu.vector_store %arg9[%c0_31, %c0_32, %c0_33], %91 {strides = array<i32>} : memref<1x8x384xf32, #tpu.memory_space<vmem>>, vector<1x8x384xf32>,
    return
  }
  func.func @transform_0(%arg0: i32) -> (i32, i32, i32) {
    %c0_i32 = arith.constant 0 : i32
    %c0_i32_0 = arith.constant 0 : i32
    %c0_i32_1 = arith.constant 0 : i32
    return %arg0, %c0_i32, %c0_i32_0 : i32, i32, i32
  }
  func.func @transform_1(%arg0: i32) -> (i32, i32, i32) {
    %c0_i32 = arith.constant 0 : i32
    %c0_i32_0 = arith.constant 0 : i32
    %c0_i32_1 = arith.constant 0 : i32
    return %arg0, %c0_i32, %c0_i32_0 : i32, i32, i32
  }
  func.func @transform_2(%arg0: i32) -> (i32, i32, i32) {
    %c0_i32 = arith.constant 0 : i32
    %c0_i32_0 = arith.constant 0 : i32
    %c0_i32_1 = arith.constant 0 : i32
    return %arg0, %c0_i32, %c0_i32_0 : i32, i32, i32
  }
  func.func @transform_3(%arg0: i32) -> (i32, i32) {
    %c0_i32 = arith.constant 0 : i32
    %c0_i32_0 = arith.constant 0 : i32
    %c0_i32_1 = arith.constant 0 : i32
    return %c0_i32, %c0_i32_0 : i32, i32
  }
  func.func @transform_4(%arg0: i32) -> (i32, i32) {
    %c0_i32 = arith.constant 0 : i32
    %c0_i32_0 = arith.constant 0 : i32
    %c0_i32_1 = arith.constant 0 : i32
    return %c0_i32, %c0_i32_0 : i32, i32
  }
  func.func @transform_5(%arg0: i32) -> (i32, i32) {
    %c0_i32 = arith.constant 0 : i32
    %c0_i32_0 = arith.constant 0 : i32
    %c0_i32_1 = arith.constant 0 : i32
    return %c0_i32, %c0_i32_0 : i32, i32
  }
  func.func @transform_6(%arg0: i32) -> (i32, i32) {
    %c0_i32 = arith.constant 0 : i32
    %c0_i32_0 = arith.constant 0 : i32
    %c0_i32_1 = arith.constant 0 : i32
    return %c0_i32, %c0_i32_0 : i32, i32
  }
  func.func @transform_7(%arg0: i32) -> (i32, i32) {
    %c0_i32 = arith.constant 0 : i32
    %c0_i32_0 = arith.constant 0 : i32
    %c0_i32_1 = arith.constant 0 : i32
    return %c0_i32, %c0_i32_0 : i32, i32
  }
  func.func @transform_8(%arg0: i32) -> (i32, i32, i32) {
    %c0_i32 = arith.constant 0 : i32
    %c0_i32_0 = arith.constant 0 : i32
    %c0_i32_1 = arith.constant 0 : i32
    return %arg0, %c0_i32, %c0_i32_0 : i32, i32, i32
  }
}

</mosaic_0001>

<llo_original>
// kernel: tpu_custom_call.1
$region0: #{tpu_custom_call.1}
  #allocation0 [shape = 'u32[]', space=smem, size = 0x4, offset = 0x4, fixed_abs, tag = 'smem constant byte address 0x4 - core index']
  #allocation1 [shape = 'u32[72,128]{1,0:T(1,128)}', space=vmem, size = 0x9000, scoped, tag = 'internal scratch']
  #allocation2 [shape = 'bf16[4,512]{1,0:T(4,128)(2,1)}', space=vmem, size = 0x1000, scoped, tag = 'scratch operand']
  %s0 = inlined_call_operand.hbm [shape: f32[2,4,512], index: 0, kind: input, shape index: {}]
  %s1 = inlined_call_operand.hbm [shape: f32[2,4,512], index: 1, kind: input, shape index: {}]
  %s2 = inlined_call_operand.hbm [shape: f32[2,4,512], index: 2, kind: input, shape index: {}]
  %s3 = inlined_call_operand.vmem [shape: bf16[4,108], index: 3, kind: input, shape index: {}]
  %s4 = inlined_call_operand.vmem [shape: f32[4,1], index: 4, kind: input, shape index: {}]
  %s5 = inlined_call_operand.vmem [shape: bf16[8,36], index: 5, kind: input, shape index: {}]
  %s6 = inlined_call_operand.vmem [shape: bf16[8,36], index: 6, kind: input, shape index: {}]
  %s7 = inlined_call_operand.vmem [shape: f32[8,1], index: 7, kind: input, shape index: {}]
  %s8 = inlined_call_operand.hbm [shape: f32[2,8,384], index: 8, kind: output, shape index: {}]
  %s9 = sld [smem:[#allocation0]]
  $region77: #{tpu_custom_call.1} parent=0
    _
  %s11 = ssub.s32 1, %s9
  %s12 = scalar_select 0, %s11, %s9
  $region1: #{tpu_custom_call.1} parent=0
    #allocation3 [shape = 'u8[16384]{0}', space=vmem, size = 0x4000, scoped, tag = 'input window, operand 0']
    #allocation4 [shape = 's32[2]{0}', space=sflag, size = 0x8, scoped, tag = 'scoped memory for tpu_custom_call.1']
    #allocation5 [shape = 's32[2]{0}', space=sflag, size = 0x8, scoped, tag = 'scoped memory for tpu_custom_call.1']
    #allocation6 [shape = 'u8[16384]{0}', space=vmem, size = 0x4000, scoped, tag = 'input window, operand 1']
    #allocation7 [shape = 's32[2]{0}', space=sflag, size = 0x8, scoped, tag = 'scoped memory for tpu_custom_call.1']
    #allocation8 [shape = 'u8[16384]{0}', space=vmem, size = 0x4000, scoped, tag = 'input window, operand 2']
    #allocation9 [shape = 'u8[24576]{0}', space=vmem, size = 0x6000, scoped, tag = 'output window, operand 0']
    %13 = vsyncpa [#allocation4], 0
    %s14 = scalar_lea.sflag [#allocation4], 1
    %15 = vsyncpa %s14, 0
    %16 = vsyncpa [#allocation7], 0
    %s17 = scalar_lea.sflag [#allocation7], 1
    %18 = vsyncpa %s17, 0
    %19 = vsyncpa [#allocation5], 0
    %s20 = scalar_lea.sflag [#allocation5], 1
    %21 = vsyncpa %s20, 0
    loop: start=0, step=1, limit=4
    $region2: #{tpu_custom_call.1} parent=1 // loop_pre_header
      _
    $region3: #{tpu_custom_call.1} parent=1 // loop_header
      %s23 = sphi 0, %s27
      %p24 = scmp.ge.s32.totalorder %s23, 4
      %s33 = sphi 0, %s35
      %s36 = sphi 0, %s33
      %s37 = sphi 0, %s36
      %s53 = sphi 0, %s37
      %s59 = sphi 0, %s61
      %s62 = sphi 0, %s59
      %s63 = sphi 0, %s62
      %s79 = sphi 0, %s63
      %s85 = sphi 0, %s87
      %s88 = sphi 0, %s85
      %s89 = sphi 0, %s88
      %s105 = sphi 0, %s89
      %s109 = sphi 0, %s109
      %s111 = sphi 0, %s109
      %s112 = sphi 0, %s111
      %s126 = sphi 0, %s112
      %s130 = sphi 0, %s130
      %s132 = sphi 0, %s130
      %s133 = sphi 0, %s132
      %s147 = sphi 0, %s133
      %s151 = sphi 0, %s151
      %s153 = sphi 0, %s151
      %s154 = sphi 0, %s153
      %s168 = sphi 0, %s154
      %s172 = sphi 0, %s172
      %s174 = sphi 0, %s172
      %s175 = sphi 0, %s174
      %s189 = sphi 0, %s175
      %s193 = sphi 0, %s193
      %s195 = sphi 0, %s193
      %s196 = sphi 0, %s195
      %s210 = sphi 0, %s196
      %s216 = sphi 0, %s218
      %s219 = sphi 0, %s216
      %s220 = sphi 0, %s219
      %s236 = sphi 0, %s220
    $region4: #{tpu_custom_call.1} parent=1 // loop_header_branch
      %26 = sbr.rel (%p24) target = $region8
    $region5: #{tpu_custom_call.1} parent=1 // loop_body
      %s28 = ssub.s32 %s23, 1
      %s29 = ssub.s32 %s23, 2
      %s30 = sadd.s32 %s23, 1
      %s31 = ssub.s32 %s23, %s30
      %p32 = scmp.eq.s32.totalorder %s31, 0
      %s34 = sadd.s32 %s33, 1
      %s35 = scalar_select %p32, %s33, %s34
      %p38 = pneg %p32
      %p39 = scmp.eq.s32.totalorder %s23, 1
      %p40 = por %p38, %p39
      %p41 = scmp.ne.s32.totalorder %s33, %s36
      %p42 = scmp.eq.s32.totalorder %s23, 0
      %p43 = por %p41, %p42
      %p44 = scmp.ne.s32.totalorder %s33, %s36
      %p45 = scmp.eq.s32.totalorder %s28, 1
      %p46 = por %p44, %p45
      %p47 = scmp.ne.s32.totalorder %s36, %s37
      %p48 = scmp.eq.s32.totalorder %s28, 0
      %p49 = por %p47, %p48
      %p50 = scmp.ne.s32.totalorder %s36, %s37
      %p51 = scmp.eq.s32.totalorder %s29, 1
      %p52 = por %p50, %p51
      %p54 = scmp.ne.s32.totalorder %s37, %s53
      %p55 = scmp.eq.s32.totalorder %s29, 0
      %p56 = por %p54, %p55
      %s57 = ssub.s32 %s23, %s30
      %p58 = scmp.eq.s32.totalorder %s57, 0
      %s60 = sadd.s32 %s59, 1
      %s61 = scalar_select %p58, %s59, %s60
      %p64 = pneg %p58
      %p65 = scmp.eq.s32.totalorder %s23, 1
      %p66 = por %p64, %p65
      %p67 = scmp.ne.s32.totalorder %s59, %s62
      %p68 = scmp.eq.s32.totalorder %s23, 0
      %p69 = por %p67, %p68
      %p70 = scmp.ne.s32.totalorder %s59, %s62
      %p71 = scmp.eq.s32.totalorder %s28, 1
      %p72 = por %p70, %p71
      %p73 = scmp.ne.s32.totalorder %s62, %s63
      %p74 = scmp.eq.s32.totalorder %s28, 0
      %p75 = por %p73, %p74
      %p76 = scmp.ne.s32.totalorder %s62, %s63
      %p77 = scmp.eq.s32.totalorder %s29, 1
      %p78 = por %p76, %p77
      %p80 = scmp.ne.s32.totalorder %s63, %s79
      %p81 = scmp.eq.s32.totalorder %s29, 0
      %p82 = por %p80, %p81
      %s83 = ssub.s32 %s23, %s30
      %p84 = scmp.eq.s32.totalorder %s83, 0
      %s86 = sadd.s32 %s85, 1
      %s87 = scalar_select %p84, %s85, %s86
      %p90 = pneg %p84
      %p91 = scmp.eq.s32.totalorder %s23, 1
      %p92 = por %p90, %p91
      %p93 = scmp.ne.s32.totalorder %s85, %s88
      %p94 = scmp.eq.s32.totalorder %s23, 0
      %p95 = por %p93, %p94
      %p96 = scmp.ne.s32.totalorder %s85, %s88
      %p97 = scmp.eq.s32.totalorder %s28, 1
      %p98 = por %p96, %p97
      %p99 = scmp.ne.s32.totalorder %s88, %s89
      %p100 = scmp.eq.s32.totalorder %s28, 0
      %p101 = por %p99, %p100
      %p102 = scmp.ne.s32.totalorder %s88, %s89
      %p103 = scmp.eq.s32.totalorder %s29, 1
      %p104 = por %p102, %p103
      %p106 = scmp.ne.s32.totalorder %s89, %s105
      %p107 = scmp.eq.s32.totalorder %s29, 0
      %p108 = por %p106, %p107
      %s110 = sadd.s32 %s109, 1
      %p113 = scmp.eq.s32.totalorder %s23, 1
      %p114 = scmp.ne.s32.totalorder %s109, %s111
      %p115 = scmp.eq.s32.totalorder %s23, 0
      %p116 = por %p114, %p115
      %p117 = scmp.ne.s32.totalorder %s109, %s111
      %p118 = scmp.eq.s32.totalorder %s28, 1
      %p119 = por %p117, %p118
      %p120 = scmp.ne.s32.totalorder %s111, %s112
      %p121 = scmp.eq.s32.totalorder %s28, 0
      %p122 = por %p120, %p121
      %p123 = scmp.ne.s32.totalorder %s111, %s112
      %p124 = scmp.eq.s32.totalorder %s29, 1
      %p125 = por %p123, %p124
      %p127 = scmp.ne.s32.totalorder %s112, %s126
      %p128 = scmp.eq.s32.totalorder %s29, 0
      %p129 = por %p127, %p128
      %s131 = sadd.s32 %s130, 1
      %p134 = scmp.eq.s32.totalorder %s23, 1
      %p135 = scmp.ne.s32.totalorder %s130, %s132
      %p136 = scmp.eq.s32.totalorder %s23, 0
      %p137 = por %p135, %p136
      %p138 = scmp.ne.s32.totalorder %s130, %s132
      %p139 = scmp.eq.s32.totalorder %s28, 1
      %p140 = por %p138, %p139
      %p141 = scmp.ne.s32.totalorder %s132, %s133
      %p142 = scmp.eq.s32.totalorder %s28, 0
      %p143 = por %p141, %p142
      %p144 = scmp.ne.s32.totalorder %s132, %s133
      %p145 = scmp.eq.s32.totalorder %s29, 1
      %p146 = por %p144, %p145
      %p148 = scmp.ne.s32.totalorder %s133, %s147
      %p149 = scmp.eq.s32.totalorder %s29, 0
      %p150 = por %p148, %p149
      %s152 = sadd.s32 %s151, 1
      %p155 = scmp.eq.s32.totalorder %s23, 1
      %p156 = scmp.ne.s32.totalorder %s151, %s153
      %p157 = scmp.eq.s32.totalorder %s23, 0
      %p158 = por %p156, %p157
      %p159 = scmp.ne.s32.totalorder %s151, %s153
      %p160 = scmp.eq.s32.totalorder %s28, 1
      %p161 = por %p159, %p160
      %p162 = scmp.ne.s32.totalorder %s153, %s154
      %p163 = scmp.eq.s32.totalorder %s28, 0
      %p164 = por %p162, %p163
      %p165 = scmp.ne.s32.totalorder %s153, %s154
      %p166 = scmp.eq.s32.totalorder %s29, 1
      %p167 = por %p165, %p166
      %p169 = scmp.ne.s32.totalorder %s154, %s168
      %p170 = scmp.eq.s32.totalorder %s29, 0
      %p171 = por %p169, %p170
      %s173 = sadd.s32 %s172, 1
      %p176 = scmp.eq.s32.totalorder %s23, 1
      %p177 = scmp.ne.s32.totalorder %s172, %s174
      %p178 = scmp.eq.s32.totalorder %s23, 0
      %p179 = por %p177, %p178
      %p180 = scmp.ne.s32.totalorder %s172, %s174
      %p181 = scmp.eq.s32.totalorder %s28, 1
      %p182 = por %p180, %p181
      %p183 = scmp.ne.s32.totalorder %s174, %s175
      %p184 = scmp.eq.s32.totalorder %s28, 0
      %p185 = por %p183, %p184
      %p186 = scmp.ne.s32.totalorder %s174, %s175
      %p187 = scmp.eq.s32.totalorder %s29, 1
      %p188 = por %p186, %p187
      %p190 = scmp.ne.s32.totalorder %s175, %s189
      %p191 = scmp.eq.s32.totalorder %s29, 0
      %p192 = por %p190, %p191
      %s194 = sadd.s32 %s193, 1
      %p197 = scmp.eq.s32.totalorder %s23, 1
      %p198 = scmp.ne.s32.totalorder %s193, %s195
      %p199 = scmp.eq.s32.totalorder %s23, 0
      %p200 = por %p198, %p199
      %p201 = scmp.ne.s32.totalorder %s193, %s195
      %p202 = scmp.eq.s32.totalorder %s28, 1
      %p203 = por %p201, %p202
      %p204 = scmp.ne.s32.totalorder %s195, %s196
      %p205 = scmp.eq.s32.totalorder %s28, 0
      %p206 = por %p204, %p205
      %p207 = scmp.ne.s32.totalorder %s195, %s196
      %p208 = scmp.eq.s32.totalorder %s29, 1
      %p209 = por %p207, %p208
      %p211 = scmp.ne.s32.totalorder %s196, %s210
      %p212 = scmp.eq.s32.totalorder %s29, 0
      %p213 = por %p211, %p212
      %s214 = ssub.s32 %s23, %s30
      %p215 = scmp.eq.s32.totalorder %s214, 0
      %s217 = sadd.s32 %s216, 1
      %s218 = scalar_select %p215, %s216, %s217
      %p221 = pneg %p215
      %p222 = scmp.eq.s32.totalorder %s23, 1
      %p223 = por %p221, %p222
      %p224 = scmp.ne.s32.totalorder %s216, %s219
      %p225 = scmp.eq.s32.totalorder %s23, 0
      %p226 = por %p224, %p225
      %p227 = scmp.ne.s32.totalorder %s216, %s219
      %p228 = scmp.eq.s32.totalorder %s28, 1
      %p229 = por %p227, %p228
      %p230 = scmp.ne.s32.totalorder %s219, %s220
      %p231 = scmp.eq.s32.totalorder %s28, 0
      %p232 = por %p230, %p231
      %p233 = scmp.ne.s32.totalorder %s219, %s220
      %p234 = scmp.eq.s32.totalorder %s29, 1
      %p235 = por %p233, %p234
      %p237 = scmp.ne.s32.totalorder %s220, %s236
      %p238 = scmp.eq.s32.totalorder %s29, 0
      %p239 = por %p237, %p238
      %p240 = scmp.le.s32.totalorder 1, %s23
      %p241 = scmp.lt.s32.totalorder %s23, 3
      %p242 = pnand %p240, %p241
      %p243 = pneg %p242
      // Predicated region
      $region9: #{tpu_custom_call.1} parent=5 // pred_check
        _
      $region10: #{tpu_custom_call.1} parent=5 // pred_check_branch
        %245 = sbr.rel (%p242) target = $region12
      $region11: #{tpu_custom_call.1} parent=5 // pred_region
        %s246 = ssub.s32 %s23, 1
        // Predicated region
        $region13: #{tpu_custom_call.1} parent=11 // pred_check
          %p247 = pneg %p122
        $region14: #{tpu_custom_call.1} parent=11 // pred_check_branch
          %249 = sbr.rel (%p247) target = $region16
        $region15: #{tpu_custom_call.1} parent=11 // pred_region
          _
        $region16: #{tpu_custom_call.1} parent=11 // pred_fallthru
          _
        // Predicated region
        $region17: #{tpu_custom_call.1} parent=11 // pred_check
          %p250 = pneg %p143
        $region18: #{tpu_custom_call.1} parent=11 // pred_check_branch
          %252 = sbr.rel (%p250) target = $region20
        $region19: #{tpu_custom_call.1} parent=11 // pred_region
          _
        $region20: #{tpu_custom_call.1} parent=11 // pred_fallthru
          _
        // Predicated region
        $region21: #{tpu_custom_call.1} parent=11 // pred_check
          %p253 = pneg %p164
        $region22: #{tpu_custom_call.1} parent=11 // pred_check_branch
          %255 = sbr.rel (%p253) target = $region24
        $region23: #{tpu_custom_call.1} parent=11 // pred_region
          _
        $region24: #{tpu_custom_call.1} parent=11 // pred_fallthru
          _
        // Predicated region
        $region25: #{tpu_custom_call.1} parent=11 // pred_check
          %p256 = pneg %p185
        $region26: #{tpu_custom_call.1} parent=11 // pred_check_branch
          %258 = sbr.rel (%p256) target = $region28
        $region27: #{tpu_custom_call.1} parent=11 // pred_region
          _
        $region28: #{tpu_custom_call.1} parent=11 // pred_fallthru
          _
        // Predicated region
        $region29: #{tpu_custom_call.1} parent=11 // pred_check
          %p259 = pneg %p206
        $region30: #{tpu_custom_call.1} parent=11 // pred_check_branch
          %261 = sbr.rel (%p259) target = $region32
        $region31: #{tpu_custom_call.1} parent=11 // pred_region
          _
        $region32: #{tpu_custom_call.1} parent=11 // pred_fallthru
          _
      $region12: #{tpu_custom_call.1} parent=5 // pred_fallthru
        _
      %p262 = scmp.lt.s32.totalorder %s23, 2
      // Predicated region
      $region33: #{tpu_custom_call.1} parent=5 // pred_check
        %p263 = pneg %p262
      $region34: #{tpu_custom_call.1} parent=5 // pred_check_branch
        %265 = sbr.rel (%p263) target = $region36
      $region35: #{tpu_custom_call.1} parent=5 // pred_region
        // Predicated region
        $region37: #{tpu_custom_call.1} parent=35 // pred_check
          %p266 = pneg %p43
        $region38: #{tpu_custom_call.1} parent=35 // pred_check_branch
          %268 = sbr.rel (%p266) target = $region40
        $region39: #{tpu_custom_call.1} parent=35 // pred_region
          %s269 = sand.u32 %s33, 1
          %s270 = scalar_lea.sflag [#allocation4], %s269
          %s271 = sand.u32 %s33, 1
          %s272 = smul.addr %s271, 16
          %s273 = scalar_lea.vmem [#allocation3], %s272
          %275 = vsyncadd %s270, 0
          %s276 = smul.addr %s23, 4
          %s277 = smul.addr %s276, 4
          %s278 = scalar_lea.hbm %s0, %s277
          %s280 = sshll.u32 %s278, 4
          %s281 = int_to_ptr.hbm [resolvable:$true] %s280
          %s282 = sshll.u32 %s273, 4
          %s283 = int_to_ptr.vmem [resolvable:$true] %s282
          %285 = dma.hbm_to_vmem [thread:$0]  %s281, 256, %s283, %s270
        $region40: #{tpu_custom_call.1} parent=35 // pred_fallthru
          _
        // Predicated region
        $region41: #{tpu_custom_call.1} parent=35 // pred_check
          %p286 = pneg %p69
        $region42: #{tpu_custom_call.1} parent=35 // pred_check_branch
          %288 = sbr.rel (%p286) target = $region44
        $region43: #{tpu_custom_call.1} parent=35 // pred_region
          %s289 = sand.u32 %s23, 1
          %s290 = scalar_lea.sflag [#allocation7], %s289
          %s291 = sand.u32 %s59, 1
          %s292 = smul.addr %s291, 16
          %s293 = scalar_lea.vmem [#allocation6], %s292
          %295 = vsyncadd %s290, 0
          %s296 = smul.addr %s23, 4
          %s297 = smul.addr %s296, 4
          %s298 = scalar_lea.hbm %s1, %s297
          %s300 = sshll.u32 %s298, 4
          %s301 = int_to_ptr.hbm [resolvable:$true] %s300
          %s302 = sshll.u32 %s293, 4
          %s303 = int_to_ptr.vmem [resolvable:$true] %s302
          %305 = dma.hbm_to_vmem [thread:$0]  %s301, 256, %s303, %s290
        $region44: #{tpu_custom_call.1} parent=35 // pred_fallthru
          _
        // Predicated region
        $region45: #{tpu_custom_call.1} parent=35 // pred_check
          %p306 = pneg %p95
        $region46: #{tpu_custom_call.1} parent=35 // pred_check_branch
          %308 = sbr.rel (%p306) target = $region48
        $region47: #{tpu_custom_call.1} parent=35 // pred_region
          %s309 = sand.u32 %s23, 1
          %s310 = scalar_lea.sflag [#allocation7], %s309
          %s311 = sand.u32 %s85, 1
          %s312 = smul.addr %s311, 16
          %s313 = scalar_lea.vmem [#allocation8], %s312
          %315 = vsyncadd %s310, 0
          %s316 = smul.addr %s23, 4
          %s317 = smul.addr %s316, 4
          %s318 = scalar_lea.hbm %s2, %s317
          %s320 = sshll.u32 %s318, 4
          %s321 = int_to_ptr.hbm [resolvable:$true] %s320
          %s322 = sshll.u32 %s313, 4
          %s323 = int_to_ptr.vmem [resolvable:$true] %s322
          %325 = dma.hbm_to_vmem [thread:$0]  %s321, 256, %s323, %s310
        $region48: #{tpu_custom_call.1} parent=35 // pred_fallthru
          _
      $region36: #{tpu_custom_call.1} parent=5 // pred_fallthru
        _
      %p326 = scmp.le.s32.totalorder 1, %s23
      %p327 = scmp.lt.s32.totalorder %s23, 3
      %p328 = pnand %p326, %p327
      %p329 = pneg %p328
      // Predicated region
      $region49: #{tpu_custom_call.1} parent=5 // pred_check
        _
      $region50: #{tpu_custom_call.1} parent=5 // pred_check_branch
        %331 = sbr.rel (%p328) target = $region52
      $region51: #{tpu_custom_call.1} parent=5 // pred_region
        %s332 = ssub.s32 %s23, 1
        %s333 = sand.u32 %s36, 1
        %s334 = scalar_lea.sflag [#allocation4], %s333
        %s335 = sand.u32 %s36, 1
        %s336 = smul.addr %s335, 16
        %s337 = scalar_lea.vmem [#allocation3], %s336
        // Predicated region
        $region53: #{tpu_custom_call.1} parent=51 // pred_check
          %p338 = pneg %p49
        $region54: #{tpu_custom_call.1} parent=51 // pred_check_branch
          %340 = sbr.rel (%p338) target = $region56
        $region55: #{tpu_custom_call.1} parent=51 // pred_region
          %342 = dma.done %s334, 256
        $region56: #{tpu_custom_call.1} parent=51 // pred_fallthru
          _
        %s343 = sand.u32 %s28, 1
        %s344 = scalar_lea.sflag [#allocation7], %s343
        %s345 = sand.u32 %s62, 1
        %s346 = smul.addr %s345, 16
        %s347 = scalar_lea.vmem [#allocation6], %s346
        // Predicated region
        $region57: #{tpu_custom_call.1} parent=51 // pred_check
          %p348 = pneg %p75
        $region58: #{tpu_custom_call.1} parent=51 // pred_check_branch
          %350 = sbr.rel (%p348) target = $region60
        $region59: #{tpu_custom_call.1} parent=51 // pred_region
          %352 = dma.done %s344, 256
        $region60: #{tpu_custom_call.1} parent=51 // pred_fallthru
          _
        %s353 = sand.u32 %s28, 1
        %s354 = scalar_lea.sflag [#allocation7], %s353
        %s355 = sand.u32 %s88, 1
        %s356 = smul.addr %s355, 16
        %s357 = scalar_lea.vmem [#allocation8], %s356
        // Predicated region
        $region61: #{tpu_custom_call.1} parent=51 // pred_check
          %p358 = pneg %p101
        $region62: #{tpu_custom_call.1} parent=51 // pred_check_branch
          %360 = sbr.rel (%p358) target = $region64
        $region63: #{tpu_custom_call.1} parent=51 // pred_region
          %362 = dma.done %s354, 256
        $region64: #{tpu_custom_call.1} parent=51 // pred_fallthru
          _
        %s363 = sand.u32 %s36, 1
        %s364 = scalar_lea.sflag [#allocation4], %s363
        %s365 = sand.u32 %s36, 1
        %s366 = smul.addr %s365, 16
        %s367 = scalar_lea.vmem [#allocation3], %s366
        %p368 = pneg %p49
        %p369 = pneg %p46
        %s370 = sand.u32 %s28, 1
        %s371 = scalar_lea.sflag [#allocation7], %s370
        %s372 = sand.u32 %s62, 1
        %s373 = smul.addr %s372, 16
        %s374 = scalar_lea.vmem [#allocation6], %s373
        %p375 = pneg %p75
        %p376 = pneg %p72
        %s377 = sand.u32 %s28, 1
        %s378 = scalar_lea.sflag [#allocation7], %s377
        %s379 = sand.u32 %s88, 1
        %s380 = smul.addr %s379, 16
        %s381 = scalar_lea.vmem [#allocation8], %s380
        %p382 = pneg %p101
        %p383 = pneg %p98
        %p384 = pneg %p122
        %p385 = pneg %p119
        %p386 = pneg %p143
        %p387 = pneg %p140
        %p388 = pneg %p164
        %p389 = pneg %p161
        %p390 = pneg %p185
        %p391 = pneg %p182
        %p392 = pneg %p206
        %p393 = pneg %p203
        %p394 = pneg %p232
        %p395 = pneg %p229
        %s396 = sand.u32 %s219, 1
        %s397 = scalar_lea.sflag [#allocation5], %s396
        %s398 = sand.u32 %s219, 1
        %s399 = smul.addr %s398, 24
        %s400 = scalar_lea.vmem [#allocation9], %s399
        %v402 = vld [vmem:[%s337] sm:$0xff]
        %v403 = vld [vmem:[%s337 + $0x8] sm:$0xff]
        %v404 = vld [vmem:[%s347] sm:$0xff]
        %v405 = vld [vmem:[%s347 + $0x8] sm:$0xff]
        %v406 = vadd.f32 %v402, %v404
        %v407 = vadd.f32 %v403, %v405
        %v408 = vmul.f32 %v402, %v404
        %v409 = vmul.f32 %v403, %v405
        %v410 = vmax.f32 %v402, %v404
        %v411 = vmax.f32 %v403, %v405
        %414 = vst [vmem:[#allocation1] ss:$2 sm:$0xff] %v406
        %s415 = scalar_lea.vmem [#allocation1], 16
        %416 = vst [vmem:[%s415] ss:$2 sm:$0xff] %v407
        %v417 = vld.sshfl [vmem:[#allocation1] sm:$0xff pattern:$0x75316420]
        %v418 = vld.sshfl [vmem:[#allocation1 + $0x8] sm:$0xff pattern:$0x75316420]
        %v419 = vld.sshfl [vmem:[#allocation1 + $0x10] sm:$0xff pattern:$0x75316420]
        %v420 = vld.sshfl [vmem:[#allocation1 + $0x18] sm:$0xff pattern:$0x75316420]
        %s427 = scalar_lea.vmem [#allocation1], 1
        %428 = vst [vmem:[%s427] ss:$2 sm:$0xff] %v408
        %s429 = scalar_lea.vmem [#allocation1], 17
        %430 = vst [vmem:[%s429] ss:$2 sm:$0xff] %v409
        %v431 = vld.sshfl [vmem:[#allocation1] sm:$0xff pattern:$0x75316420]
        %v432 = vld.sshfl [vmem:[#allocation1 + $0x8] sm:$0xff pattern:$0x75316420]
        %v433 = vld.sshfl [vmem:[#allocation1 + $0x10] sm:$0xff pattern:$0x75316420]
        %v434 = vld.sshfl [vmem:[#allocation1 + $0x18] sm:$0xff pattern:$0x75316420]
        %441 = vst [vmem:[#allocation1] ss:$2 sm:$0xff] %v410
        %s442 = scalar_lea.vmem [#allocation1], 16
        %443 = vst [vmem:[%s442] ss:$2 sm:$0xff] %v411
        %v444 = vld.sshfl [vmem:[#allocation1] sm:$0xff pattern:$0x75316420]
        %v445 = vld.sshfl [vmem:[#allocation1 + $0x8] sm:$0xff pattern:$0x75316420]
        %v446 = vld.sshfl [vmem:[#allocation1 + $0x10] sm:$0xff pattern:$0x75316420]
        %v447 = vld.sshfl [vmem:[#allocation1 + $0x18] sm:$0xff pattern:$0x75316420]
        %vm452 = vcmask 1043456
        %v453 = vsel %vm452, %v417, %v431
        %v454 = vsel %vm452, %v418, %v432
        %v455 = vsel %vm452, %v419, %v433
        %v456 = vsel %vm452, %v420, %v434
        %v457 = vpack.c.bf16 %v454, %v453
        %v458 = vpack.c.bf16 %v456, %v455
        %v459 = vpack.c.bf16 %v445, %v444
        %v460 = vpack.c.bf16 %v447, %v446
        %v461 = vld [vmem:[%s357] sm:$0xff]
        %v462 = vld [vmem:[%s357 + $0x8] sm:$0xff]
        %465 = vst [vmem:[#allocation1] ss:$2 sm:$0xff] %v461
        %s466 = scalar_lea.vmem [#allocation1], 16
        %467 = vst [vmem:[%s466] ss:$2 sm:$0xff] %v462
        %v468 = vld.sshfl [vmem:[#allocation1] sm:$0xff pattern:$0x75316420]
        %v469 = vld.sshfl [vmem:[#allocation1 + $0x8] sm:$0xff pattern:$0x75316420]
        %v470 = vld.sshfl [vmem:[#allocation1 + $0x10] sm:$0xff pattern:$0x75316420]
        %v471 = vld.sshfl [vmem:[#allocation1 + $0x18] sm:$0xff pattern:$0x75316420]
        %v476 = vpack.c.bf16 %v469, %v468
        %v477 = vpack.c.bf16 %v471, %v470
        %v478 = vlaneseq
        %v479 = vand.u32 %v478, 127
        %v480 = vadd.s32 %v479, 128
        %v481 = vadd.s32 %v479, 256
        %vm482 = vcmp.lt.s32.totalorder %v479, 288
        %vm483 = vcmp.lt.s32.totalorder %v480, 288
        %vm484 = vcmp.lt.s32.totalorder %v481, 288
        %vm485 = vcmp.lt.s32.totalorder %v479, 0
        %v486 = vsub.s32 0, %v479
        %v487 = vsel %vm485, %v486, %v479
        %v488 = vand.u32 %v487, 65535
        %v489 = vshrl.u32 %v487, 16
        %v491 = vmul.u32 %v488, 14564
        %v492 = vmul.u32 %v488, 58254
        %v493 = vmul.u32 %v489, 14564
        %v494 = vmul.u32 %v489, 58254
        %v495 = vshll.u32 %v492, 16
        %v496 = vshrl.u32 %v492, 16
        %v497 = vshll.u32 %v493, 16
        %v498 = vshrl.u32 %v493, 16
        %vm499 = vc.u32 %v491, %v495
        %v500 = vsel %vm499, 1, 0
        %v501 = vadd.s32 %v491, %v495
        %v502 = vadd.s32 %v494, %v500
        %vm503 = vc.u32 %v501, %v497
        %v504 = vsel %vm503, 1, 0
        %v505 = vadd.s32 %v501, %v497
        %v506 = vadd.s32 %v502, %v504
        %v507 = vadd.s32 %v506, %v496
        %v508 = vadd.s32 %v507, %v498
        %v509 = vshrl.u32 %v508, 4
        %v510 = vmul.u32 %v509, 18
        %v511 = vsub.s32 %v487, %v510
        %v512 = vsub.s32 0, %v511
        %v513 = vsel %vm485, %v512, %v511
        %vm514 = vcmp.lt.s32.totalorder %v480, 0
        %v515 = vsub.s32 0, %v480
        %v516 = vsel %vm514, %v515, %v480
        %v517 = vand.u32 %v516, 65535
        %v518 = vshrl.u32 %v516, 16
        %v520 = vmul.u32 %v517, 14564
        %v521 = vmul.u32 %v517, 58254
        %v522 = vmul.u32 %v518, 14564
        %v523 = vmul.u32 %v518, 58254
        %v524 = vshll.u32 %v521, 16
        %v525 = vshrl.u32 %v521, 16
        %v526 = vshll.u32 %v522, 16
        %v527 = vshrl.u32 %v522, 16
        %vm528 = vc.u32 %v520, %v524
        %v529 = vsel %vm528, 1, 0
        %v530 = vadd.s32 %v520, %v524
        %v531 = vadd.s32 %v523, %v529
        %vm532 = vc.u32 %v530, %v526
        %v533 = vsel %vm532, 1, 0
        %v534 = vadd.s32 %v530, %v526
        %v535 = vadd.s32 %v531, %v533
        %v536 = vadd.s32 %v535, %v525
        %v537 = vadd.s32 %v536, %v527
        %v538 = vshrl.u32 %v537, 4
        %v539 = vmul.u32 %v538, 18
        %v540 = vsub.s32 %v516, %v539
        %v541 = vsub.s32 0, %v540
        %v542 = vsel %vm514, %v541, %v540
        %vm543 = vcmp.lt.s32.totalorder %v481, 0
        %v544 = vsub.s32 0, %v481
        %v545 = vsel %vm543, %v544, %v481
        %v546 = vand.u32 %v545, 65535
        %v547 = vshrl.u32 %v545, 16
        %v549 = vmul.u32 %v546, 14564
        %v550 = vmul.u32 %v546, 58254
        %v551 = vmul.u32 %v547, 14564
        %v552 = vmul.u32 %v547, 58254
        %v553 = vshll.u32 %v550, 16
        %v554 = vshrl.u32 %v550, 16
        %v555 = vshll.u32 %v551, 16
        %v556 = vshrl.u32 %v551, 16
        %vm557 = vc.u32 %v549, %v553
        %v558 = vsel %vm557, 1, 0
        %v559 = vadd.s32 %v549, %v553
        %v560 = vadd.s32 %v552, %v558
        %vm561 = vc.u32 %v559, %v555
        %v562 = vsel %vm561, 1, 0
        %v563 = vadd.s32 %v559, %v555
        %v564 = vadd.s32 %v560, %v562
        %v565 = vadd.s32 %v564, %v554
        %v566 = vadd.s32 %v565, %v556
        %v567 = vshrl.u32 %v566, 4
        %v568 = vmul.u32 %v567, 18
        %v569 = vsub.s32 %v545, %v568
        %v570 = vsub.s32 0, %v569
        %v571 = vsel %vm543, %v570, %v569
        %vm572 = vcmp.ne.s32.totalorder %v513, 0
        %vm573 = vcmp.ne.s32.totalorder %v542, 0
        %vm574 = vcmp.ne.s32.totalorder %v571, 0
        %vm575 = vcmp.lt.s32.totalorder %v513, 0
        %vm576 = vcmp.lt.s32.totalorder %v542, 0
        %vm577 = vcmp.lt.s32.totalorder %v571, 0
        %vm578 = vmand %vm575, %vm572
        %vm579 = vmand %vm576, %vm573
        %vm580 = vmand %vm577, %vm574
        %v581 = vadd.s32 %v513, 18
        %v582 = vadd.s32 %v542, 18
        %v583 = vadd.s32 %v571, 18
        %v584 = vsel %vm578, %v581, %v513
        %v585 = vsel %vm579, %v582, %v542
        %v586 = vsel %vm580, %v583, %v571
        %vm587 = vcmp.lt.s32.totalorder %v584, 16
        %vm588 = vcmp.lt.s32.totalorder %v585, 16
        %vm589 = vcmp.lt.s32.totalorder %v586, 16
        %vm590 = vmand %vm482, %vm587
        %vm591 = vmand %vm483, %vm588
        %vm592 = vmand %vm484, %vm589
        %v593 = vsel %vm590, 1, 0
        %v594 = vsel %vm591, 1, 0
        %v595 = vsel %vm592, 1, 0
        %v596 = vcvt.s32.f32 %v593
        %v597 = vcvt.s32.f32 %v594
        %v598 = vcvt.s32.f32 %v595
        %v603 = vunpack.c.l.b16 %v457
        %v604 = vunpack.c.h.b16 %v457
        %v605 = vunpack.c.l.b16 %v458
        %v606 = vunpack.c.l.b16 %v459
        %v607 = vunpack.c.h.b16 %v459
        %v608 = vunpack.c.l.b16 %v460
        %v609 = vpack.c.b16 %v606, %v603
        %v610 = vpack.c.b16 %v607, %v604
        %v611 = vpack.c.b16 %v608, %v605
        %v612 = vunpack.c.h.b16 %v458
        %v613 = vunpack.c.h.b16 %v460
        %v614 = vpack.c.b16 %v613, %v612
        %v615 = vrot.slane %v609, 2
        %v616 = vrot.slane %v610, 2
        %v617 = vrot.slane %v611, 2
        %v618 = vrot.slane %v614, 2
        %619 = vrot.lane.b32.xlu0 %v615, 127
        %v620 = vpop.permute.xlu0 %619
        %621 = vrot.lane.b32.xlu0 %v616, 127
        %v622 = vpop.permute.xlu0 %621
        %623 = vrot.lane.b32.xlu0 %v617, 127
        %v624 = vpop.permute.xlu0 %623
        %625 = vrot.lane.b32.xlu0 %v618, 127
        %v626 = vpop.permute.xlu0 %625
        %vm627 = vcmask 1039360
        %v628 = vsel %vm627, %v620, %v622
        %v629 = vsel %vm627, %v622, %v624
        %v630 = vsel %vm627, %v624, %v626
        %v631 = vpack.c.b16 %v603, %v603
        %v632 = vpack.c.b16 %v604, %v604
        %v633 = vpack.c.b16 %v605, %v605
        %v634 = vpack.c.b16 %v612, %v612
        %v635 = vpack.c.b16 %v606, %v606
        %v636 = vpack.c.b16 %v607, %v607
        %v637 = vpack.c.b16 %v608, %v608
        %v638 = vpack.c.b16 %v613, %v613
        %639 = vrot.lane.b32.xlu0 %v631, 126
        %v640 = vpop.permute.xlu0 %639
        %641 = vrot.lane.b32.xlu0 %v632, 126
        %v642 = vpop.permute.xlu0 %641
        %643 = vrot.lane.b32.xlu0 %v633, 126
        %v644 = vpop.permute.xlu0 %643
        %645 = vrot.lane.b32.xlu0 %v634, 126
        %v646 = vpop.permute.xlu0 %645
        %647 = vrot.lane.b32.xlu0 %v635, 126
        %v648 = vpop.permute.xlu0 %647
        %649 = vrot.lane.b32.xlu0 %v636, 126
        %v650 = vpop.permute.xlu0 %649
        %651 = vrot.lane.b32.xlu0 %v637, 126
        %v652 = vpop.permute.xlu0 %651
        %653 = vrot.lane.b32.xlu0 %v638, 126
        %v654 = vpop.permute.xlu0 %653
        %vm655 = vcmask 1031168
        %v656 = vsel %vm655, %v640, %v642
        %v657 = vsel %vm655, %v642, %v644
        %v658 = vsel %vm655, %v644, %v646
        %v659 = vsel %vm655, %v648, %v650
        %v660 = vsel %vm655, %v650, %v652
        %v661 = vsel %vm655, %v652, %v654
        %v662 = vrot.slane %v609, 6
        %v663 = vrot.slane %v610, 6
        %v664 = vrot.slane %v611, 6
        %v665 = vrot.slane %v614, 6
        %666 = vrot.lane.b32.xlu0 %v662, 110
        %v667 = vpop.permute.xlu0 %666
        %668 = vrot.lane.b32.xlu0 %v663, 110
        %v669 = vpop.permute.xlu0 %668
        %670 = vrot.lane.b32.xlu0 %v664, 110
        %v671 = vpop.permute.xlu0 %670
        %672 = vrot.lane.b32.xlu0 %v665, 110
        %v673 = vpop.permute.xlu0 %672
        %vm674 = vcmask 900096
        %v675 = vsel %vm674, %v667, %v669
        %v676 = vsel %vm674, %v669, %v671
        %v677 = vsel %vm674, %v671, %v673
        %678 = vrot.lane.b32.xlu0 %v609, 109
        %v679 = vpop.permute.xlu0 %678
        %680 = vrot.lane.b32.xlu0 %v610, 109
        %v681 = vpop.permute.xlu0 %680
        %682 = vrot.lane.b32.xlu0 %v611, 109
        %v683 = vpop.permute.xlu0 %682
        %684 = vrot.lane.b32.xlu0 %v614, 109
        %v685 = vpop.permute.xlu0 %684
        %vm686 = vcmask 891904
        %v687 = vsel %vm686, %v679, %v681
        %v688 = vsel %vm686, %v681, %v683
        %v689 = vsel %vm686, %v683, %v685
        %690 = vrot.lane.b32.xlu0 %v615, 108
        %v691 = vpop.permute.xlu0 %690
        %692 = vrot.lane.b32.xlu0 %v616, 108
        %v693 = vpop.permute.xlu0 %692
        %694 = vrot.lane.b32.xlu0 %v617, 108
        %v695 = vpop.permute.xlu0 %694
        %696 = vrot.lane.b32.xlu0 %v618, 108
        %v697 = vpop.permute.xlu0 %696
        %vm698 = vcmask 883712
        %v699 = vsel %vm698, %v691, %v693
        %v700 = vsel %vm698, %v693, %v695
        %v701 = vsel %vm698, %v695, %v697
        %702 = vrot.lane.b32.xlu0 %v631, 92
        %v703 = vpop.permute.xlu0 %702
        %704 = vrot.lane.b32.xlu0 %v632, 92
        %v705 = vpop.permute.xlu0 %704
        %706 = vrot.lane.b32.xlu0 %v633, 92
        %v707 = vpop.permute.xlu0 %706
        %708 = vrot.lane.b32.xlu0 %v634, 92
        %v709 = vpop.permute.xlu0 %708
        %710 = vrot.lane.b32.xlu0 %v635, 92
        %v711 = vpop.permute.xlu0 %710
        %712 = vrot.lane.b32.xlu0 %v636, 92
        %v713 = vpop.permute.xlu0 %712
        %714 = vrot.lane.b32.xlu0 %v637, 92
        %v715 = vpop.permute.xlu0 %714
        %716 = vrot.lane.b32.xlu0 %v638, 92
        %v717 = vpop.permute.xlu0 %716
        %vm718 = vcmask 752640
        %v719 = vsel %vm718, %v703, %v705
        %v720 = vsel %vm718, %v705, %v707
        %v721 = vsel %vm718, %v707, %v709
        %v722 = vsel %vm718, %v711, %v713
        %v723 = vsel %vm718, %v713, %v715
        %v724 = vsel %vm718, %v715, %v717
        %725 = vrot.lane.b32.xlu0 %v662, 91
        %v726 = vpop.permute.xlu0 %725
        %727 = vrot.lane.b32.xlu0 %v663, 91
        %v728 = vpop.permute.xlu0 %727
        %729 = vrot.lane.b32.xlu0 %v664, 91
        %v730 = vpop.permute.xlu0 %729
        %731 = vrot.lane.b32.xlu0 %v665, 91
        %v732 = vpop.permute.xlu0 %731
        %vm733 = vcmask 744448
        %v734 = vsel %vm733, %v726, %v728
        %v735 = vsel %vm733, %v728, %v730
        %v736 = vsel %vm733, %v730, %v732
        %737 = vrot.lane.b32.xlu0 %v609, 90
        %v738 = vpop.permute.xlu0 %737
        %739 = vrot.lane.b32.xlu0 %v610, 90
        %v740 = vpop.permute.xlu0 %739
        %741 = vrot.lane.b32.xlu0 %v611, 90
        %v742 = vpop.permute.xlu0 %741
        %743 = vrot.lane.b32.xlu0 %v614, 90
        %v744 = vpop.permute.xlu0 %743
        %vm745 = vcmask 736256
        %v746 = vsel %vm745, %v738, %v740
        %v747 = vsel %vm745, %v740, %v742
        %v748 = vsel %vm745, %v742, %v744
        %vm749 = vcmask 1045504
        %v752 = vsel %vm749, %v609, %v628
        %v756 = vsel %vm749, %v610, %v629
        %v760 = vsel %vm749, %v611, %v630
        %v763 = vsel %vm452, %v628, %v656
        %v766 = vsel %vm452, %v629, %v657
        %v769 = vsel %vm452, %v630, %v658
        %vm771 = vcmask 1041408
        %v774 = vsel %vm771, %v659, %v675
        %v778 = vsel %vm771, %v660, %v676
        %v782 = vsel %vm771, %v661, %v677
        %v786 = vsel %vm749, %v687, %v699
        %v790 = vsel %vm749, %v688, %v700
        %v794 = vsel %vm749, %v689, %v701
        %v797 = vsel %vm452, %v699, %v719
        %v800 = vsel %vm452, %v700, %v720
        %v803 = vsel %vm452, %v701, %v721
        %v807 = vsel %vm771, %v722, %v734
        %v811 = vsel %vm771, %v723, %v735
        %v815 = vsel %vm771, %v724, %v736
        %v817 = vld [vmem:[%s3] sm:$0x3]
        %v818 = vld [vmem:[%s4] sm:$0xf]
        %820 = vset.pattern.permute.xlu0 0
        %821 = vperm.xlu0 %820, %v818
        %v822 = vpop.permute.xlu0 %821
        %vm824 = vcmask 883712
        %v826 = vsel %vm824, %v817, 0
        %v829 = vsel %vm749, %v746, 0
        %v832 = vsel %vm749, %v747, 0
        %v835 = vsel %vm749, %v748, 0
        %837 = vmatpush.bf16.msra.mxu0 0
        %838 = vmatpush.bf16.msra.mxu0 %v829
        %839 = vmatpush.bf16.msra.mxu0 %v807
        %840 = vmatpush.bf16.msra.mxu0 %v797
        %841 = vmatpush.bf16.msra.mxu0 %v786
        %842 = vmatpush.bf16.msra.mxu0 %v774
        %843 = vmatpush.bf16.msra.mxu0 %v763
        %844 = vmatpush.bf16.msra.mxu0 %v752
        %845 = vmatmul.bf16.gmra.mxu0 %v826
        %v846 = vpop.f32.mrf.mxu0
        %v847 = vadd.f32 %v822, %v846
        %v848 = vpop.f32.mrf.mxu0
        %849 = vdwg.mxu0
        %850 = vmatpush.bf16.msra.mxu0 0
        %851 = vmatpush.bf16.msra.mxu0 %v832
        %852 = vmatpush.bf16.msra.mxu0 %v811
        %853 = vmatpush.bf16.msra.mxu0 %v800
        %854 = vmatpush.bf16.msra.mxu0 %v790
        %855 = vmatpush.bf16.msra.mxu0 %v778
        %856 = vmatpush.bf16.msra.mxu0 %v766
        %857 = vmatpush.bf16.msra.mxu0 %v756
        %858 = vmatmul.bf16.gmra.mxu0 %v826
        %v859 = vpop.f32.mrf.mxu0
        %v860 = vadd.f32 %v822, %v859
        %v861 = vpop.f32.mrf.mxu0
        %862 = vdwg.mxu0
        %863 = vmatpush.bf16.msra.mxu0 0
        %864 = vmatpush.bf16.msra.mxu0 %v835
        %865 = vmatpush.bf16.msra.mxu0 %v815
        %866 = vmatpush.bf16.msra.mxu0 %v803
        %867 = vmatpush.bf16.msra.mxu0 %v794
        %868 = vmatpush.bf16.msra.mxu0 %v782
        %869 = vmatpush.bf16.msra.mxu0 %v769
        %870 = vmatpush.bf16.msra.mxu0 %v760
        %871 = vmatmul.bf16.gmra.mxu0 %v826
        %v872 = vpop.f32.mrf.mxu0
        %v873 = vadd.f32 %v822, %v872
        %v874 = vpop.f32.mrf.mxu0
        %875 = vdwg.mxu0
        %v876 = vmax.f32 %v847, 0.0
        %v877 = vmax.f32 %v860, 0.0
        %v878 = vmax.f32 %v873, 0.0
        %v879 = vmul.f32 %v876, %v596
        %v880 = vmul.f32 %v877, %v597
        %v881 = vmul.f32 %v878, %v598
        %882 = vst [vmem:[#allocation2] sm:$0xff] 0
        %v883 = vpack.c.bf16 %v880, %v879
        %v884 = vpack.c.bf16 %v881, %v881
        %v887 = vrot.slane %v883, 2
        %v888 = vrot.slane %v884, 4
        %v889 = vrot.slane %v884, 6
        %v892 = vsel %vm771, %v883, %v887
        %vm893 = vcmask 1045508
        %v896 = vsel %vm893, %v888, %v889
        %v897 = vsel %vm452, %v892, %v896
        %899 = vrot.lane.b32.xlu0 %v897, 19
        %v900 = vpop.permute.xlu0 %899
        %v901 = vrot.slane %v900, 6
        %vm902 = vcmask 154624
        %v903 = vsel %vm902, %v901, %v900
        %vm905 = vcmask 1041560
        %vm906 = vcmask 1043458
        %vm907 = vmor %vm906, %vm905
        %vm908 = vmor %vm893, %vm907
        %vm909 = vcmask 154630
        %vm910 = vmor %vm909, %vm908
        %911 = vst.msk [vmem:[#allocation2] sm:$0xff] %vm910, %v903
        %v912 = vld [vmem:[#allocation2] sm:$0xff]
        %914 = vst [vmem:[#allocation1] ss:$4 sm:$0xff] %v912
        %v915 = vld.sshfl [vmem:[#allocation1] sm:$0xff pattern:$0x73625140]
        %v916 = vld.sshfl [vmem:[#allocation1 + $0x8] sm:$0xff pattern:$0x73625140]
        %v917 = vld.sshfl [vmem:[#allocation1 + $0x10] sm:$0xff pattern:$0x73625140]
        %s918 = scalar_lea.vmem [#allocation1], 1
        %919 = vst [vmem:[%s918] ss:$4 sm:$0xff] %v912
        %v920 = vld.sshfl [vmem:[#allocation1] sm:$0xff pattern:$0x73625140]
        %v922 = vld.sshfl [vmem:[#allocation1 + $0x8] sm:$0xff pattern:$0x73625140]
        %v924 = vld.sshfl [vmem:[#allocation1 + $0x10] sm:$0xff pattern:$0x73625140]
        %v926 = vld.sshfl [vmem:[#allocation1 + $0x18] sm:$0xff pattern:$0x73625140]
        %928 = vrot.lane.b32.xlu0 %v920, 127
        %v929 = vpop.permute.xlu0 %928
        %930 = vrot.lane.b32.xlu0 %v922, 127
        %v931 = vpop.permute.xlu0 %930
        %932 = vrot.lane.b32.xlu0 %v924, 127
        %v933 = vpop.permute.xlu0 %932
        %934 = vrot.lane.b32.xlu0 %v926, 127
        %v935 = vpop.permute.xlu0 %934
        %v936 = vsel %vm627, %v929, %v931
        %v937 = vsel %vm627, %v931, %v933
        %v938 = vsel %vm627, %v933, %v935
        %s939 = scalar_lea.vmem [#allocation1], 2
        %940 = vst [vmem:[%s939] ss:$4 sm:$0xff] %v912
        %v941 = vld.sshfl [vmem:[#allocation1] sm:$0xff pattern:$0x73625140]
        %v943 = vld.sshfl [vmem:[#allocation1 + $0x8] sm:$0xff pattern:$0x73625140]
        %v945 = vld.sshfl [vmem:[#allocation1 + $0x10] sm:$0xff pattern:$0x73625140]
        %v947 = vld.sshfl [vmem:[#allocation1 + $0x18] sm:$0xff pattern:$0x73625140]
        %949 = vrot.lane.b32.xlu0 %v941, 126
        %v950 = vpop.permute.xlu0 %949
        %951 = vrot.lane.b32.xlu0 %v943, 126
        %v952 = vpop.permute.xlu0 %951
        %953 = vrot.lane.b32.xlu0 %v945, 126
        %v954 = vpop.permute.xlu0 %953
        %955 = vrot.lane.b32.xlu0 %v947, 126
        %v956 = vpop.permute.xlu0 %955
        %v957 = vsel %vm655, %v950, %v952
        %v958 = vsel %vm655, %v952, %v954
        %v959 = vsel %vm655, %v954, %v956
        %s960 = scalar_lea.vmem [#allocation1], 3
        %961 = vst [vmem:[%s960] ss:$4 sm:$0xff] %v912
        %v962 = vld.sshfl [vmem:[#allocation1] sm:$0xff pattern:$0x73625140]
        %v964 = vld.sshfl [vmem:[#allocation1 + $0x8] sm:$0xff pattern:$0x73625140]
        %v966 = vld.sshfl [vmem:[#allocation1 + $0x10] sm:$0xff pattern:$0x73625140]
        %v968 = vld.sshfl [vmem:[#allocation1 + $0x18] sm:$0xff pattern:$0x73625140]
        %970 = vrot.lane.b32.xlu0 %v962, 110
        %v971 = vpop.permute.xlu0 %970
        %972 = vrot.lane.b32.xlu0 %v964, 110
        %v973 = vpop.permute.xlu0 %972
        %974 = vrot.lane.b32.xlu0 %v966, 110
        %v975 = vpop.permute.xlu0 %974
        %976 = vrot.lane.b32.xlu0 %v968, 110
        %v977 = vpop.permute.xlu0 %976
        %v978 = vsel %vm674, %v971, %v973
        %v979 = vsel %vm674, %v973, %v975
        %v980 = vsel %vm674, %v975, %v977
        %981 = vst [vmem:[#allocation1] ss:$4 sm:$0xff] %v912
        %v982 = vld.sshfl [vmem:[#allocation1] sm:$0xff pattern:$0x73625140]
        %v984 = vld.sshfl [vmem:[#allocation1 + $0x8] sm:$0xff pattern:$0x73625140]
        %v986 = vld.sshfl [vmem:[#allocation1 + $0x10] sm:$0xff pattern:$0x73625140]
        %v988 = vld.sshfl [vmem:[#allocation1 + $0x18] sm:$0xff pattern:$0x73625140]
        %990 = vrot.lane.b32.xlu0 %v982, 109
        %v991 = vpop.permute.xlu0 %990
        %992 = vrot.lane.b32.xlu0 %v984, 109
        %v993 = vpop.permute.xlu0 %992
        %994 = vrot.lane.b32.xlu0 %v986, 109
        %v995 = vpop.permute.xlu0 %994
        %996 = vrot.lane.b32.xlu0 %v988, 109
        %v997 = vpop.permute.xlu0 %996
        %v998 = vsel %vm686, %v991, %v993
        %v999 = vsel %vm686, %v993, %v995
        %v1000 = vsel %vm686, %v995, %v997
        %s1001 = scalar_lea.vmem [#allocation1], 1
        %1002 = vst [vmem:[%s1001] ss:$4 sm:$0xff] %v912
        %v1003 = vld.sshfl [vmem:[#allocation1] sm:$0xff pattern:$0x73625140]
        %v1005 = vld.sshfl [vmem:[#allocation1 + $0x8] sm:$0xff pattern:$0x73625140]
        %v1007 = vld.sshfl [vmem:[#allocation1 + $0x10] sm:$0xff pattern:$0x73625140]
        %v1009 = vld.sshfl [vmem:[#allocation1 + $0x18] sm:$0xff pattern:$0x73625140]
        %1011 = vrot.lane.b32.xlu0 %v1003, 108
        %v1012 = vpop.permute.xlu0 %1011
        %1013 = vrot.lane.b32.xlu0 %v1005, 108
        %v1014 = vpop.permute.xlu0 %1013
        %1015 = vrot.lane.b32.xlu0 %v1007, 108
        %v1016 = vpop.permute.xlu0 %1015
        %1017 = vrot.lane.b32.xlu0 %v1009, 108
        %v1018 = vpop.permute.xlu0 %1017
        %v1019 = vsel %vm698, %v1012, %v1014
        %v1020 = vsel %vm698, %v1014, %v1016
        %v1021 = vsel %vm698, %v1016, %v1018
        %s1022 = scalar_lea.vmem [#allocation1], 2
        %1023 = vst [vmem:[%s1022] ss:$4 sm:$0xff] %v912
        %v1024 = vld.sshfl [vmem:[#allocation1] sm:$0xff pattern:$0x73625140]
        %v1026 = vld.sshfl [vmem:[#allocation1 + $0x8] sm:$0xff pattern:$0x73625140]
        %v1028 = vld.sshfl [vmem:[#allocation1 + $0x10] sm:$0xff pattern:$0x73625140]
        %v1030 = vld.sshfl [vmem:[#allocation1 + $0x18] sm:$0xff pattern:$0x73625140]
        %1032 = vrot.lane.b32.xlu0 %v1024, 92
        %v1033 = vpop.permute.xlu0 %1032
        %1034 = vrot.lane.b32.xlu0 %v1026, 92
        %v1035 = vpop.permute.xlu0 %1034
        %1036 = vrot.lane.b32.xlu0 %v1028, 92
        %v1037 = vpop.permute.xlu0 %1036
        %1038 = vrot.lane.b32.xlu0 %v1030, 92
        %v1039 = vpop.permute.xlu0 %1038
        %v1040 = vsel %vm718, %v1033, %v1035
        %v1041 = vsel %vm718, %v1035, %v1037
        %v1042 = vsel %vm718, %v1037, %v1039
        %s1043 = scalar_lea.vmem [#allocation1], 3
        %1044 = vst [vmem:[%s1043] ss:$4 sm:$0xff] %v912
        %v1045 = vld.sshfl [vmem:[#allocation1] sm:$0xff pattern:$0x73625140]
        %v1047 = vld.sshfl [vmem:[#allocation1 + $0x8] sm:$0xff pattern:$0x73625140]
        %v1049 = vld.sshfl [vmem:[#allocation1 + $0x10] sm:$0xff pattern:$0x73625140]
        %v1051 = vld.sshfl [vmem:[#allocation1 + $0x18] sm:$0xff pattern:$0x73625140]
        %1053 = vrot.lane.b32.xlu0 %v1045, 91
        %v1054 = vpop.permute.xlu0 %1053
        %1055 = vrot.lane.b32.xlu0 %v1047, 91
        %v1056 = vpop.permute.xlu0 %1055
        %1057 = vrot.lane.b32.xlu0 %v1049, 91
        %v1058 = vpop.permute.xlu0 %1057
        %1059 = vrot.lane.b32.xlu0 %v1051, 91
        %v1060 = vpop.permute.xlu0 %1059
        %v1061 = vsel %vm733, %v1054, %v1056
        %v1062 = vsel %vm733, %v1056, %v1058
        %v1063 = vsel %vm733, %v1058, %v1060
        %1064 = vst [vmem:[#allocation1] ss:$4 sm:$0xff] %v912
        %v1065 = vld.sshfl [vmem:[#allocation1] sm:$0xff pattern:$0x73625140]
        %v1067 = vld.sshfl [vmem:[#allocation1 + $0x8] sm:$0xff pattern:$0x73625140]
        %v1069 = vld.sshfl [vmem:[#allocation1 + $0x10] sm:$0xff pattern:$0x73625140]
        %v1071 = vld.sshfl [vmem:[#allocation1 + $0x18] sm:$0xff pattern:$0x73625140]
        %1073 = vrot.lane.b32.xlu0 %v1065, 90
        %v1074 = vpop.permute.xlu0 %1073
        %1075 = vrot.lane.b32.xlu0 %v1067, 90
        %v1076 = vpop.permute.xlu0 %1075
        %1077 = vrot.lane.b32.xlu0 %v1069, 90
        %v1078 = vpop.permute.xlu0 %1077
        %1079 = vrot.lane.b32.xlu0 %v1071, 90
        %v1080 = vpop.permute.xlu0 %1079
        %v1081 = vsel %vm745, %v1074, %v1076
        %v1082 = vsel %vm745, %v1076, %v1078
        %v1083 = vsel %vm745, %v1078, %v1080
        %v1085 = vsel %vm771, %v915, %v936
        %v1087 = vsel %vm771, %v916, %v937
        %v1089 = vsel %vm771, %v917, %v938
        %v1091 = vsel %vm452, %v1085, %v957
        %v1093 = vsel %vm452, %v1087, %v958
        %v1095 = vsel %vm452, %v1089, %v959
        %v1097 = vsel %vm749, %v1091, %v978
        %v1100 = vsel %vm749, %v1093, %v979
        %v1103 = vsel %vm749, %v1095, %v980
        %v1107 = vsel %vm771, %v998, %v1019
        %v1110 = vsel %vm771, %v999, %v1020
        %v1113 = vsel %vm771, %v1000, %v1021
        %v1115 = vsel %vm452, %v1107, %v1040
        %v1117 = vsel %vm452, %v1110, %v1041
        %v1119 = vsel %vm452, %v1113, %v1042
        %v1121 = vsel %vm749, %v1115, %v1061
        %v1124 = vsel %vm749, %v1117, %v1062
        %v1127 = vsel %vm749, %v1119, %v1063
        %v1131 = vunpack.c.l.b16 %v476
        %v1132 = vunpack.c.h.b16 %v476
        %v1133 = vunpack.c.l.b16 %v477
        %v1134 = vpack.c.b16 %v1131, %v1131
        %v1135 = vpack.c.b16 %v1132, %v1132
        %v1136 = vpack.c.b16 %v1133, %v1133
        %v1137 = vunpack.c.h.b16 %v477
        %v1138 = vpack.c.b16 %v1137, %v1137
        %v1139 = vrot.slane %v1134, 6
        %v1140 = vrot.slane %v1135, 6
        %v1141 = vrot.slane %v1136, 6
        %v1142 = vrot.slane %v1138, 6
        %1143 = vrot.lane.b32.xlu0 %v1139, 127
        %v1144 = vpop.permute.xlu0 %1143
        %1145 = vrot.lane.b32.xlu0 %v1140, 127
        %v1146 = vpop.permute.xlu0 %1145
        %1147 = vrot.lane.b32.xlu0 %v1141, 127
        %v1148 = vpop.permute.xlu0 %1147
        %1149 = vrot.lane.b32.xlu0 %v1142, 127
        %v1150 = vpop.permute.xlu0 %1149
        %v1151 = vsel %vm627, %v1144, %v1146
        %v1152 = vsel %vm627, %v1146, %v1148
        %v1153 = vsel %vm627, %v1148, %v1150
        %1154 = vrot.lane.b32.xlu0 %v1134, 126
        %v1155 = vpop.permute.xlu0 %1154
        %1156 = vrot.lane.b32.xlu0 %v1135, 126
        %v1157 = vpop.permute.xlu0 %1156
        %1158 = vrot.lane.b32.xlu0 %v1136, 126
        %v1159 = vpop.permute.xlu0 %1158
        %1160 = vrot.lane.b32.xlu0 %v1138, 126
        %v1161 = vpop.permute.xlu0 %1160
        %v1162 = vsel %vm655, %v1155, %v1157
        %v1163 = vsel %vm655, %v1157, %v1159
        %v1164 = vsel %vm655, %v1159, %v1161
        %v1165 = vrot.slane %v1134, 2
        %v1166 = vrot.slane %v1135, 2
        %v1167 = vrot.slane %v1136, 2
        %v1168 = vrot.slane %v1138, 2
        %1169 = vrot.lane.b32.xlu0 %v1165, 110
        %v1170 = vpop.permute.xlu0 %1169
        %1171 = vrot.lane.b32.xlu0 %v1166, 110
        %v1172 = vpop.permute.xlu0 %1171
        %1173 = vrot.lane.b32.xlu0 %v1167, 110
        %v1174 = vpop.permute.xlu0 %1173
        %1175 = vrot.lane.b32.xlu0 %v1168, 110
        %v1176 = vpop.permute.xlu0 %1175
        %v1177 = vsel %vm674, %v1170, %v1172
        %v1178 = vsel %vm674, %v1172, %v1174
        %v1179 = vsel %vm674, %v1174, %v1176
        %1180 = vrot.lane.b32.xlu0 %v1134, 109
        %v1181 = vpop.permute.xlu0 %1180
        %1182 = vrot.lane.b32.xlu0 %v1135, 109
        %v1183 = vpop.permute.xlu0 %1182
        %1184 = vrot.lane.b32.xlu0 %v1136, 109
        %v1185 = vpop.permute.xlu0 %1184
        %1186 = vrot.lane.b32.xlu0 %v1138, 109
        %v1187 = vpop.permute.xlu0 %1186
        %v1188 = vsel %vm686, %v1181, %v1183
        %v1189 = vsel %vm686, %v1183, %v1185
        %v1190 = vsel %vm686, %v1185, %v1187
        %1191 = vrot.lane.b32.xlu0 %v1139, 108
        %v1192 = vpop.permute.xlu0 %1191
        %1193 = vrot.lane.b32.xlu0 %v1140, 108
        %v1194 = vpop.permute.xlu0 %1193
        %1195 = vrot.lane.b32.xlu0 %v1141, 108
        %v1196 = vpop.permute.xlu0 %1195
        %1197 = vrot.lane.b32.xlu0 %v1142, 108
        %v1198 = vpop.permute.xlu0 %1197
        %v1199 = vsel %vm698, %v1192, %v1194
        %v1200 = vsel %vm698, %v1194, %v1196
        %v1201 = vsel %vm698, %v1196, %v1198
        %1202 = vrot.lane.b32.xlu0 %v1134, 92
        %v1203 = vpop.permute.xlu0 %1202
        %1204 = vrot.lane.b32.xlu0 %v1135, 92
        %v1205 = vpop.permute.xlu0 %1204
        %1206 = vrot.lane.b32.xlu0 %v1136, 92
        %v1207 = vpop.permute.xlu0 %1206
        %1208 = vrot.lane.b32.xlu0 %v1138, 92
        %v1209 = vpop.permute.xlu0 %1208
        %v1210 = vsel %vm718, %v1203, %v1205
        %v1211 = vsel %vm718, %v1205, %v1207
        %v1212 = vsel %vm718, %v1207, %v1209
        %1213 = vrot.lane.b32.xlu0 %v1165, 91
        %v1214 = vpop.permute.xlu0 %1213
        %1215 = vrot.lane.b32.xlu0 %v1166, 91
        %v1216 = vpop.permute.xlu0 %1215
        %1217 = vrot.lane.b32.xlu0 %v1167, 91
        %v1218 = vpop.permute.xlu0 %1217
        %1219 = vrot.lane.b32.xlu0 %v1168, 91
        %v1220 = vpop.permute.xlu0 %1219
        %v1221 = vsel %vm733, %v1214, %v1216
        %v1222 = vsel %vm733, %v1216, %v1218
        %v1223 = vsel %vm733, %v1218, %v1220
        %1224 = vrot.lane.b32.xlu0 %v1134, 90
        %v1225 = vpop.permute.xlu0 %1224
        %1226 = vrot.lane.b32.xlu0 %v1135, 90
        %v1227 = vpop.permute.xlu0 %1226
        %1228 = vrot.lane.b32.xlu0 %v1136, 90
        %v1229 = vpop.permute.xlu0 %1228
        %1230 = vrot.lane.b32.xlu0 %v1138, 90
        %v1231 = vpop.permute.xlu0 %1230
        %v1232 = vsel %vm745, %v1225, %v1227
        %v1233 = vsel %vm745, %v1227, %v1229
        %v1234 = vsel %vm745, %v1229, %v1231
        %v1237 = vsel %vm771, %v1134, %v1151
        %v1240 = vsel %vm771, %v1135, %v1152
        %v1243 = vsel %vm771, %v1136, %v1153
        %v1245 = vsel %vm452, %v1237, %v1162
        %v1247 = vsel %vm452, %v1240, %v1163
        %v1249 = vsel %vm452, %v1243, %v1164
        %v1251 = vsel %vm749, %v1245, %v1177
        %v1254 = vsel %vm749, %v1247, %v1178
        %v1257 = vsel %vm749, %v1249, %v1179
        %v1261 = vsel %vm771, %v1188, %v1199
        %v1264 = vsel %vm771, %v1189, %v1200
        %v1267 = vsel %vm771, %v1190, %v1201
        %v1269 = vsel %vm452, %v1261, %v1210
        %v1271 = vsel %vm452, %v1264, %v1211
        %v1273 = vsel %vm452, %v1267, %v1212
        %v1275 = vsel %vm749, %v1269, %v1221
        %v1278 = vsel %vm749, %v1271, %v1222
        %v1281 = vsel %vm749, %v1273, %v1223
        %v1283 = vld [vmem:[%s5] sm:$0xf]
        %v1284 = vld [vmem:[%s6] sm:$0xf]
        %vm1285 = vcmask 293888
        %v1287 = vsel %vm1285, %v1284, 0
        %v1290 = vsel %vm771, %v1232, 0
        %v1293 = vsel %vm771, %v1233, 0
        %v1296 = vsel %vm771, %v1234, 0
        %1298 = vmatpush.bf16.msra.mxu0 0
        %1299 = vmatpush.bf16.msra.mxu0 0
        %1300 = vmatpush.bf16.msra.mxu0 0
        %1301 = vmatpush.bf16.msra.mxu0 0
        %1302 = vmatpush.bf16.msra.mxu0 0
        %1303 = vmatpush.bf16.msra.mxu0 %v1290
        %1304 = vmatpush.bf16.msra.mxu0 %v1275
        %1305 = vmatpush.bf16.msra.mxu0 %v1251
        %1306 = vmatmul.bf16.gmra.mxu0 %v1287
        %v1307 = vpop.f32.mrf.mxu0
        %v1308 = vadd.f32 0.0, %v1307
        %v1309 = vpop.f32.mrf.mxu0
        %1310 = vdwg.mxu0
        %1311 = vmatpush.bf16.msra.mxu0 0
        %1312 = vmatpush.bf16.msra.mxu0 0
        %1313 = vmatpush.bf16.msra.mxu0 0
        %1314 = vmatpush.bf16.msra.mxu0 0
        %1315 = vmatpush.bf16.msra.mxu0 0
        %1316 = vmatpush.bf16.msra.mxu0 %v1293
        %1317 = vmatpush.bf16.msra.mxu0 %v1278
        %1318 = vmatpush.bf16.msra.mxu0 %v1254
        %1319 = vmatmul.bf16.gmra.mxu0 %v1287
        %v1320 = vpop.f32.mrf.mxu0
        %v1321 = vadd.f32 0.0, %v1320
        %v1322 = vpop.f32.mrf.mxu0
        %1323 = vdwg.mxu0
        %1324 = vmatpush.bf16.msra.mxu0 0
        %1325 = vmatpush.bf16.msra.mxu0 0
        %1326 = vmatpush.bf16.msra.mxu0 0
        %1327 = vmatpush.bf16.msra.mxu0 0
        %1328 = vmatpush.bf16.msra.mxu0 0
        %1329 = vmatpush.bf16.msra.mxu0 %v1296
        %1330 = vmatpush.bf16.msra.mxu0 %v1281
        %1331 = vmatpush.bf16.msra.mxu0 %v1257
        %1332 = vmatmul.bf16.gmra.mxu0 %v1287
        %v1333 = vpop.f32.mrf.mxu0
        %v1334 = vadd.f32 0.0, %v1333
        %v1335 = vpop.f32.mrf.mxu0
        %1336 = vdwg.mxu0
        %v1338 = vsel %vm1285, %v1283, 0
        %v1341 = vsel %vm771, %v1081, 0
        %v1344 = vsel %vm771, %v1082, 0
        %v1347 = vsel %vm771, %v1083, 0
        %1349 = vmatpush.bf16.msra.mxu0 0
        %1350 = vmatpush.bf16.msra.mxu0 0
        %1351 = vmatpush.bf16.msra.mxu0 0
        %1352 = vmatpush.bf16.msra.mxu0 0
        %1353 = vmatpush.bf16.msra.mxu0 0
        %1354 = vmatpush.bf16.msra.mxu0 %v1341
        %1355 = vmatpush.bf16.msra.mxu0 %v1121
        %1356 = vmatpush.bf16.msra.mxu0 %v1097
        %1357 = vmatmul.bf16.gmra.mxu0 %v1338
        %v1358 = vpop.f32.mrf.mxu0
        %v1359 = vadd.f32 %v1308, %v1358
        %v1360 = vpop.f32.mrf.mxu0
        %1361 = vdwg.mxu0
        %1362 = vmatpush.bf16.msra.mxu0 0
        %1363 = vmatpush.bf16.msra.mxu0 0
        %1364 = vmatpush.bf16.msra.mxu0 0
        %1365 = vmatpush.bf16.msra.mxu0 0
        %1366 = vmatpush.bf16.msra.mxu0 0
        %1367 = vmatpush.bf16.msra.mxu0 %v1344
        %1368 = vmatpush.bf16.msra.mxu0 %v1124
        %1369 = vmatpush.bf16.msra.mxu0 %v1100
        %1370 = vmatmul.bf16.gmra.mxu0 %v1338
        %v1371 = vpop.f32.mrf.mxu0
        %v1372 = vadd.f32 %v1321, %v1371
        %v1373 = vpop.f32.mrf.mxu0
        %1374 = vdwg.mxu0
        %1375 = vmatpush.bf16.msra.mxu0 0
        %1376 = vmatpush.bf16.msra.mxu0 0
        %1377 = vmatpush.bf16.msra.mxu0 0
        %1378 = vmatpush.bf16.msra.mxu0 0
        %1379 = vmatpush.bf16.msra.mxu0 0
        %1380 = vmatpush.bf16.msra.mxu0 %v1347
        %1381 = vmatpush.bf16.msra.mxu0 %v1127
        %1382 = vmatpush.bf16.msra.mxu0 %v1103
        %1383 = vmatmul.bf16.gmra.mxu0 %v1338
        %v1384 = vpop.f32.mrf.mxu0
        %v1385 = vadd.f32 %v1334, %v1384
        %v1386 = vpop.f32.mrf.mxu0
        %1387 = vdwg.mxu0
        %v1388 = vld [vmem:[%s7] sm:$0xff]
        %1390 = vset.pattern.permute.xlu0 0
        %1391 = vperm.xlu0 %1390, %v1388
        %v1392 = vpop.permute.xlu0 %1391
        %v1394 = vadd.f32 %v1359, %v1392
        %v1395 = vadd.f32 %v1372, %v1392
        %v1396 = vadd.f32 %v1385, %v1392
        %v1397 = vmax.f32 %v1394, 0.0
        %v1398 = vmax.f32 %v1395, 0.0
        %v1399 = vmax.f32 %v1396, 0.0
        %1400 = vst [vmem:[%s400] sm:$0xff] %v1397
        %1401 = vst [vmem:[%s400 + $0x8] sm:$0xff] %v1398
        %1402 = vst [vmem:[%s400 + $0x10] sm:$0xff] %v1399
        %s1403 = sand.u32 %s219, 1
        %s1404 = scalar_lea.sflag [#allocation5], %s1403
        %s1405 = sand.u32 %s219, 1
        %s1406 = smul.addr %s1405, 24
        %s1407 = scalar_lea.vmem [#allocation9], %s1406
        // Predicated region
        $region65: #{tpu_custom_call.1} parent=51 // pred_check
          %p1408 = pneg %p229
        $region66: #{tpu_custom_call.1} parent=51 // pred_check_branch
          %1410 = sbr.rel (%p1408) target = $region68
        $region67: #{tpu_custom_call.1} parent=51 // pred_region
          %1412 = vsyncadd %s1404, 0
          %s1413 = smul.addr %s28, 3
          %s1414 = smul.addr %s1413, 8
          %s1415 = scalar_lea.hbm %s8, %s1414
          %s1417 = sshll.u32 %s1407, 4
          %s1418 = int_to_ptr.vmem [resolvable:$true] %s1417
          %s1419 = sshll.u32 %s1415, 4
          %s1420 = int_to_ptr.hbm [resolvable:$true] %s1419
          %1422 = dma.vmem_to_hbm [thread:$0]  %s1418, 384, %s1420, %s1404
        $region68: #{tpu_custom_call.1} parent=51 // pred_fallthru
          _
      $region52: #{tpu_custom_call.1} parent=5 // pred_fallthru
        _
      %p1423 = scmp.le.s32.totalorder 2, %s23
      // Predicated region
      $region69: #{tpu_custom_call.1} parent=5 // pred_check
        %p1424 = pneg %p1423
      $region70: #{tpu_custom_call.1} parent=5 // pred_check_branch
        %1426 = sbr.rel (%p1424) target = $region72
      $region71: #{tpu_custom_call.1} parent=5 // pred_region
        %s1427 = ssub.s32 %s23, 2
        // Predicated region
        $region73: #{tpu_custom_call.1} parent=71 // pred_check
          %p1428 = pneg %p235
        $region74: #{tpu_custom_call.1} parent=71 // pred_check_branch
          %1430 = sbr.rel (%p1428) target = $region76
        $region75: #{tpu_custom_call.1} parent=71 // pred_region
          %s1431 = sand.u32 %s220, 1
          %s1432 = scalar_lea.sflag [#allocation5], %s1431
          %s1433 = sand.u32 %s220, 1
          %s1434 = smul.addr %s1433, 24
          %s1435 = scalar_lea.vmem [#allocation9], %s1434
          %1437 = dma.done %s1432, 384
        $region76: #{tpu_custom_call.1} parent=71 // pred_fallthru
          _
      $region72: #{tpu_custom_call.1} parent=5 // pred_fallthru
        _
    $region6: #{tpu_custom_call.1} parent=1 // loop_footer
      %s27 = sadd.s32 1, %s23
    $region7: #{tpu_custom_call.1} parent=1 // loop_footer_branch
      %22 = sbr.rel target = $region3
    $region8: #{tpu_custom_call.1} parent=1 // loop_exit
      _
    %1438 = vsyncpa [#allocation4], 1
    %s1439 = scalar_lea.sflag [#allocation4], 1
    %1440 = vsyncpa %s1439, 1
    %1441 = vsyncpa [#allocation7], 1
    %s1442 = scalar_lea.sflag [#allocation7], 1
    %1443 = vsyncpa %s1442, 1
    %1444 = vsyncpa [#allocation5], 1
    %s1445 = scalar_lea.sflag [#allocation5], 1
    %1446 = vsyncpa %s1445, 1

</llo_original>
